<compile_context>
chip_gen: v7x
topology: tpu7x:2x2x1
jax: 0.10.0
libtpu: 0.0.40
codegen_flags: <defaults>
</compile_context>

<pallas_src>
import jax
import jax.numpy as jnp
from jax.experimental import pallas as pl
from jax.experimental.pallas import tpu as pltpu


# ---------------------------------------------------------------------------
# Kernel
# ---------------------------------------------------------------------------
def classifier_kernel(x_ref, w_ref, bvu_ref, wwrow_ref, bfc_ref, logits_ref):
    bb, N, L = x_ref.shape          # bags per block, instances per bag, feat dim
    D = wwrow_ref.shape[-1]         # gated-attention hidden dim (multiple of 128)
    F = w_ref.shape[-1]             # 2*D + CPAD

    # (bb, N, L) -> (bb*N, L): free relabel (N == 8 -> sublane-aligned merge).
    x = x_ref[...].reshape(bb * N, L).astype(w_ref.dtype)

    # Single fused MXU pass over [attention_V | attention_U | classifier_fc],
    # f32 accumulation; bias = [bV | bU | 0].
    h = jnp.dot(x, w_ref[...], preferred_element_type=jnp.float32) + bvu_ref[...]
    h = h.reshape(bb, N, F)                                   # (bb, N, 2D+CPAD) f32

    # D == 128 -> every split below sits on a (8,128) lane-tile boundary (free).
    a_v = jnp.tanh(h[..., :D])                                # attention_V + Tanh
    a_u = jax.nn.sigmoid(h[..., D:2 * D])                     # attention_U + Sigmoid
    xw = h[..., 2 * D:]                                       # x @ Wfc (lane-padded)

    # attention_weights (K == 1): VPU broadcast-mul + lane reduce (no 1-wide
    # MXU matmul).  bw omitted: softmax over N is shift-invariant for K == 1.
    score = jnp.sum(a_v * a_u * wwrow_ref[...], axis=-1, keepdims=True)  # (bb, N, 1)

    # Per-bag softmax over the instance axis.
    m = jnp.max(score, axis=1, keepdims=True)
    e = jnp.exp(score - m)
    attn = e / jnp.sum(e, axis=1, keepdims=True)              # (bb, N, 1)

    # Classifier fc folded into the pooling by linearity:
    #   logits = sum_n attn_n * (x_n @ Wfc) + bfc      -> lane-dense (bb, CPAD)
    logits_ref[...] = jnp.sum(attn * xw, axis=1) + bfc_ref[...]


# ---------------------------------------------------------------------------
# Parameter construction / fusion
# ---------------------------------------------------------------------------
def make_params(key, L=512, D=128, K=1, num_cls=3):
    """PyTorch-Linear-style init; weights stored as (in_features, out_features)."""
    ks = jax.random.split(key, 8)

    def lin(kw, kb, fan_in, fan_out):
        bound = 1.0 / jnp.sqrt(fan_in)
        w = jax.random.uniform(kw, (fan_in, fan_out), jnp.float32, -bound, bound)
        b = jax.random.uniform(kb, (1, fan_out), jnp.float32, -bound, bound)
        return w, b

    wv, bv = lin(ks[0], ks[1], L, D)          # attention_V Linear
    wu, bu = lin(ks[2], ks[3], L, D)          # attention_U Linear
    ww, bw = lin(ks[4], ks[5], D, K)          # attention_weights Linear
    wfc, bfc = lin(ks[6], ks[7], L, num_cls)  # classifier fc
    return dict(wv=wv, bv=bv, wu=wu, bu=bu, ww=ww, bw=bw, wfc=wfc, bfc=bfc)


def fuse_params(params, matmul_dtype=jnp.bfloat16):
    """One-time packing into the kernel's fused layout (requires K == 1)."""
    L, D = params["wv"].shape
    K = params["ww"].shape[1]
    C = params["wfc"].shape[1]
    assert K == 1, "kernel implements the module default K = 1"
    assert D % 128 == 0, "D must be a multiple of 128 (lane-aligned h splits)"
    CPAD = max(128, -(-C // 128) * 128)       # lane-dense output width

    wfc_pad = jnp.zeros((L, CPAD), jnp.float32).at[:, :C].set(params["wfc"])
    bfc_pad = jnp.zeros((1, CPAD), jnp.float32).at[:, :C].set(params["bfc"])
    w_fused = jnp.concatenate([params["wv"], params["wu"], wfc_pad], axis=1)
    bvu = jnp.concatenate(
        [params["bv"], params["bu"], jnp.zeros((1, CPAD), jnp.float32)], axis=1)

    return dict(
        w=w_fused.astype(matmul_dtype),           # (L, 2D+CPAD)  MXU operand
        bvu=bvu.astype(jnp.float32),              # (1, 2D+CPAD)  f32 epilogue
        wwrow=params["ww"].T.astype(jnp.float32), # (1, D)
        bfc=bfc_pad,                              # (1, CPAD)
        # bw intentionally dropped: for K == 1 it shifts every instance score
        # equally and the softmax is shift-invariant, so it cannot change
        # attn, afeat or logits.
        num_cls=C,
    )


# ---------------------------------------------------------------------------
# Wrappers
# ---------------------------------------------------------------------------
def classifier_forward_batched(xb, fused, bags_per_block=8):
    """xb: (B, N, L) float -> dict(logits, Y_prob, Y_hat), each (B, num_cls).

    One pallas_call for all B bags; weights VMEM-resident across the grid.
    bags_per_block=32 gives an effective MXU M of 256 on v6e/v7x; 8 is plenty
    for small demos and keeps VMEM use tiny (fits v7x's 64 MiB easily).
    """
    B, N, L = xb.shape
    C = int(fused["num_cls"])
    CPAD = fused["bfc"].shape[1]
    F = fused["w"].shape[1]

    # Pick a bag-block size that keeps the (bb, CPAD) output block either a
    # multiple of 8 sublanes or equal to the (padded) bag count.
    bb = min(bags_per_block, B)
    if bb < B and bb % 8 != 0:
        bb = max(8, (bb // 8) * 8)
    B_pad = -(-B // bb) * bb
    xb_p = xb if B_pad == B else jnp.concatenate(
        [xb, jnp.zeros((B_pad - B, N, L), xb.dtype)], axis=0)

    grid = (B_pad // bb,)
    itemsize = jnp.dtype(xb_p.dtype).itemsize
    w_bytes = sum(int(fused[k].size) * jnp.dtype(fused[k].dtype).itemsize
                  for k in ("w", "bvu", "wwrow", "bfc"))
    cost = pl.CostEstimate(
        flops=2 * B_pad * N * L * F + 8 * B_pad * N * F,
        transcendentals=B_pad * N * (2 * fused["wwrow"].shape[-1] + 1),
        bytes_accessed=int(xb_p.size) * itemsize + w_bytes + B_pad * CPAD * 4,
    )

    logits_pad = pl.pallas_call(
        classifier_kernel,
        out_shape=jax.ShapeDtypeStruct((B_pad, CPAD), jnp.float32),
        grid_spec=pltpu.PrefetchScalarGridSpec(
            num_scalar_prefetch=0,
            grid=grid,
            in_specs=[
                pl.BlockSpec((bb, N, L), lambda b: (b, 0, 0)),       # per-bag-block x
                pl.BlockSpec(fused["w"].shape, lambda b: (0, 0)),    # resident weights
                pl.BlockSpec(fused["bvu"].shape, lambda b: (0, 0)),
                pl.BlockSpec(fused["wwrow"].shape, lambda b: (0, 0)),
                pl.BlockSpec(fused["bfc"].shape, lambda b: (0, 0)),
            ],
            out_specs=pl.BlockSpec((bb, CPAD), lambda b: (b, 0)),    # lane-dense out
        ),
        compiler_params=pltpu.CompilerParams(
            dimension_semantics=("parallel",)),                      # v7x: 2 TCs
        cost_estimate=cost,
    )(xb_p, fused["w"], fused["bvu"], fused["wwrow"], fused["bfc"])

    logits = logits_pad[:B, :C]
    prob = jax.nn.sigmoid(logits)
    hat = (prob >= 0.5).astype(jnp.float32)
    return {"logits": logits, "Y_prob": prob, "Y_hat": hat}


def classifier_forward(x, fused):
    """x: (N, 1, L) float32 -> dict(logits, Y_prob, Y_hat), each (1, num_cls).

    Matches the original PyTorch module interface (a single bag).
    """
    x2 = jnp.squeeze(x, axis=1)                    # (N, L)
    return classifier_forward_batched(x2[None], fused, bags_per_block=1)


# ---------------------------------------------------------------------------
# Pure-JAX reference mirroring the PyTorch module
# ---------------------------------------------------------------------------
def _ref_one_bag(x2, params):
    a_v = jnp.tanh(x2 @ params["wv"] + params["bv"])
    a_u = jax.nn.sigmoid(x2 @ params["wu"] + params["bu"])
    a = (a_v * a_u) @ params["ww"] + params["bw"]    # (N, K)
    a_t = jax.nn.softmax(a.T, axis=1)                # (K, N)
    afeat = a_t @ x2                                 # (K, L)
    return afeat @ params["wfc"] + params["bfc"]     # (K, num_cls)


def classifier_forward_ref(x, params):
    x2 = jnp.squeeze(x, axis=1)
    logits = _ref_one_bag(x2, params)
    prob = jax.nn.sigmoid(logits)
    return {"logits": logits, "Y_prob": prob,
            "Y_hat": (prob >= 0.5).astype(jnp.float32)}


def classifier_forward_ref_batched(xb, params):
    logits = jax.vmap(lambda x2: _ref_one_bag(x2, params))(xb)[:, 0, :]
    prob = jax.nn.sigmoid(logits)
    return {"logits": logits, "Y_prob": prob,
            "Y_hat": (prob >= 0.5).astype(jnp.float32)}


# ---------------------------------------------------------------------------
if __name__ == "__main__":
    L, D, K, NUM_CLS = 512, 128, 1, 3
    N = 8        # instances per bag
    B = 16       # bags; with bags_per_block=8 -> grid=(2,), weights resident

    key = jax.random.PRNGKey(0)
    k_x, k_p = jax.random.split(key)
    xb = jax.random.normal(k_x, (B, N, L), jnp.float32)
    params = make_params(k_p, L=L, D=D, K=K, num_cls=NUM_CLS)
    ref_b = classifier_forward_ref_batched(xb, params)

    # ---- f32 weights: tight check of the fused/folded algebra --------------
    fused_f32 = fuse_params(params, matmul_dtype=jnp.float32)
    out_f32 = classifier_forward_batched(xb, fused_f32, bags_per_block=8)
    jax.block_until_ready(out_f32)
    assert jnp.allclose(out_f32["logits"], ref_b["logits"], atol=1e-4, rtol=1e-4)
    assert jnp.allclose(out_f32["Y_prob"], ref_b["Y_prob"], atol=1e-4, rtol=1e-4)

    # ---- bf16 MXU operands (perf configuration): looser tolerance ----------
    fused_bf16 = fuse_params(params, matmul_dtype=jnp.bfloat16)
    out_bf16 = classifier_forward_batched(xb, fused_bf16, bags_per_block=8)
    jax.block_until_ready(out_bf16)
    assert jnp.allclose(out_bf16["logits"], ref_b["logits"], atol=2e-2, rtol=2e-2)
    assert jnp.allclose(out_bf16["Y_prob"], ref_b["Y_prob"], atol=2e-2, rtol=2e-2)
    assert jnp.array_equal(
        out_bf16["Y_hat"], (out_bf16["Y_prob"] >= 0.5).astype(jnp.float32))

    # ---- single-bag interface matching the original module (N, 1, L) -------
    x_single = xb[0][:, None, :]
    out_single = classifier_forward(x_single, fused_f32)
    jax.block_until_ready(out_single)
    ref_single = classifier_forward_ref(x_single, params)
    assert out_single["logits"].shape == (1, NUM_CLS)
    assert jnp.allclose(out_single["logits"], ref_single["logits"],
                        atol=1e-4, rtol=1e-4)
    assert jnp.allclose(out_single["Y_prob"], ref_single["Y_prob"],
                        atol=1e-4, rtol=1e-4)

    print("KERNEL_OK")
</pallas_src>

<mosaic_0001>
module attributes {stable_mosaic.version = 11 : i64} {
  func.func @classifier_kernel(%arg0: i32, %arg1: memref<8x8x512xf32, #tpu.memory_space<vmem>>, %arg2: memref<512x384xf32, #tpu.memory_space<vmem>>, %arg3: memref<1x384xf32, #tpu.memory_space<vmem>>, %arg4: memref<1x128xf32, #tpu.memory_space<vmem>>, %arg5: memref<1x128xf32, #tpu.memory_space<vmem>>, %arg6: memref<8x128xf32, #tpu.memory_space<vmem>>) attributes {dimension_semantics = [#tpu.dimension_semantics<parallel>], iteration_bounds = array<i64: 2>, scalar_prefetch = 0 : i64, scratch_operands = 0 : i64, tpu.core_type = #tpu.core_type<tc>, window_params = [{transform_indices = @transform_0, window_bounds = array<i64: 8, 8, 512>}, {pipeline_mode = #tpu.pipeline_mode<synchronous>, transform_indices = @transform_1, window_bounds = array<i64: 512, 384>}, {pipeline_mode = #tpu.pipeline_mode<synchronous>, transform_indices = @transform_2, window_bounds = array<i64: 1, 384>}, {pipeline_mode = #tpu.pipeline_mode<synchronous>, transform_indices = @transform_3, window_bounds = array<i64: 1, 128>}, {pipeline_mode = #tpu.pipeline_mode<synchronous>, transform_indices = @transform_4, window_bounds = array<i64: 1, 128>}, {transform_indices = @transform_5, window_bounds = array<i64: 8, 128>}]} {
    %c0 = arith.constant 0 : index
    %c0_0 = arith.constant 0 : index
    %c0_1 = arith.constant 0 : index
    %0 = vector.load %arg1[%c0, %c0_0, %c0_1] : memref<8x8x512xf32, #tpu.memory_space<vmem>>, vector<8x8x512xf32>
    %1 = vector.shape_cast %0 : vector<8x8x512xf32> to vector<64x512xf32>
    %c0_2 = arith.constant 0 : index
    %c0_3 = arith.constant 0 : index
    %2 = vector.load %arg2[%c0_2, %c0_3] : memref<512x384xf32, #tpu.memory_space<vmem>>, vector<512x384xf32>
    %cst = arith.constant dense<0.000000e+00> : vector<64x384xf32>
    %3 = tpu.matmul %1, %2, %cst {dimension_numbers = #tpu.dot_dimension_numbers<[1], [0], [0], [1], [0, 0, 1, 1], [], []>} : vector<64x512xf32>, vector<512x384xf32>, vector<64x384xf32> -> vector<64x384xf32>
    %c0_4 = arith.constant 0 : index
    %c0_5 = arith.constant 0 : index
    %4 = vector.load %arg3[%c0_4, %c0_5] : memref<1x384xf32, #tpu.memory_space<vmem>>, vector<1x384xf32>
    %5 = vector.broadcast %4 : vector<1x384xf32> to vector<64x384xf32>
    %6 = arith.addf %3, %5 : vector<64x384xf32>
    %7 = vector.shape_cast %6 : vector<64x384xf32> to vector<8x8x384xf32>
    %8 = vector.extract_strided_slice %7 {offsets = [0, 0, 0], sizes = [8, 8, 128], strides = [1, 1, 1]} : vector<8x8x384xf32> to vector<8x8x128xf32>
    %9 = math.tanh %8 : vector<8x8x128xf32>
    %10 = vector.extract_strided_slice %7 {offsets = [0, 0, 128], sizes = [8, 8, 128], strides = [1, 1, 1]} : vector<8x8x384xf32> to vector<8x8x128xf32>
    %11 = arith.negf %10 : vector<8x8x128xf32>
    %12 = math.exp %11 : vector<8x8x128xf32>
    %cst_6 = arith.constant 1.000000e+00 : f32
    %13 = vector.broadcast %cst_6 : f32 to vector<8x8x128xf32>
    %14 = arith.addf %13, %12 : vector<8x8x128xf32>
    %15 = arith.divf %13, %14 : vector<8x8x128xf32>
    %16 = vector.extract_strided_slice %7 {offsets = [0, 0, 256], sizes = [8, 8, 128], strides = [1, 1, 1]} : vector<8x8x384xf32> to vector<8x8x128xf32>
    %17 = arith.mulf %9, %15 : vector<8x8x128xf32>
    %c0_7 = arith.constant 0 : index
    %c0_8 = arith.constant 0 : index
    %18 = vector.load %arg4[%c0_7, %c0_8] : memref<1x128xf32, #tpu.memory_space<vmem>>, vector<1x128xf32>
    %19 = vector.shape_cast %18 : vector<1x128xf32> to vector<1x1x128xf32>
    %20 = vector.broadcast %19 : vector<1x1x128xf32> to vector<8x8x128xf32>
    %21 = arith.mulf %17, %20 : vector<8x8x128xf32>
    %cst_9 = arith.constant dense<0.000000e+00> : vector<8x8xf32>
    %22 = vector.multi_reduction <add>, %21, %cst_9 [2] : vector<8x8x128xf32> to vector<8x8xf32>
    %23 = vector.shape_cast %22 : vector<8x8xf32> to vector<8x8x1xf32>
    %cst_10 = arith.constant dense<0xFF800000> : vector<8x1xf32>
    %24 = vector.multi_reduction <maximumf>, %23, %cst_10 [1] : vector<8x8x1xf32> to vector<8x1xf32>
    %25 = vector.shape_cast %24 : vector<8x1xf32> to vector<8x1x1xf32>
    %26 = vector.broadcast %25 : vector<8x1x1xf32> to vector<8x8x1xf32>
    %27 = arith.subf %23, %26 : vector<8x8x1xf32>
    %28 = math.exp %27 : vector<8x8x1xf32>
    %cst_11 = arith.constant dense<0.000000e+00> : vector<8x1xf32>
    %29 = vector.multi_reduction <add>, %28, %cst_11 [1] : vector<8x8x1xf32> to vector<8x1xf32>
    %30 = vector.shape_cast %29 : vector<8x1xf32> to vector<8x1x1xf32>
    %31 = vector.broadcast %30 : vector<8x1x1xf32> to vector<8x8x1xf32>
    %32 = arith.divf %28, %31 : vector<8x8x1xf32>
    %33 = vector.broadcast %32 : vector<8x8x1xf32> to vector<8x8x128xf32>
    %34 = arith.mulf %33, %16 : vector<8x8x128xf32>
    %cst_12 = arith.constant dense<0.000000e+00> : vector<8x128xf32>
    %35 = vector.multi_reduction <add>, %34, %cst_12 [1] : vector<8x8x128xf32> to vector<8x128xf32>
    %c0_13 = arith.constant 0 : index
    %c0_14 = arith.constant 0 : index
    %36 = vector.load %arg5[%c0_13, %c0_14] : memref<1x128xf32, #tpu.memory_space<vmem>>, vector<1x128xf32>
    %37 = vector.broadcast %36 : vector<1x128xf32> to vector<8x128xf32>
    %38 = arith.addf %35, %37 : vector<8x128xf32>
    %c0_15 = arith.constant 0 : index
    %c0_16 = arith.constant 0 : index
    %39 = vector.load %arg6[%c0_15, %c0_16] : memref<8x128xf32, #tpu.memory_space<vmem>>, vector<8x128xf32>
    tpu.vector_store %arg6[%c0_15, %c0_16], %38 {strides = array<i32>} : memref<8x128xf32, #tpu.memory_space<vmem>>, vector<8x128xf32>,
    return
  }
  func.func @transform_0(%arg0: i32) -> (i32, i32, i32) {
    %c0_i32 = arith.constant 0 : i32
    %c0_i32_0 = arith.constant 0 : i32
    %c0_i32_1 = arith.constant 0 : i32
    return %arg0, %c0_i32, %c0_i32_0 : i32, i32, i32
  }
  func.func @transform_1(%arg0: i32) -> (i32, i32) {
    %c0_i32 = arith.constant 0 : i32
    %c0_i32_0 = arith.constant 0 : i32
    %c0_i32_1 = arith.constant 0 : i32
    return %c0_i32, %c0_i32_0 : i32, i32
  }
  func.func @transform_2(%arg0: i32) -> (i32, i32) {
    %c0_i32 = arith.constant 0 : i32
    %c0_i32_0 = arith.constant 0 : i32
    %c0_i32_1 = arith.constant 0 : i32
    return %c0_i32, %c0_i32_0 : i32, i32
  }
  func.func @transform_3(%arg0: i32) -> (i32, i32) {
    %c0_i32 = arith.constant 0 : i32
    %c0_i32_0 = arith.constant 0 : i32
    %c0_i32_1 = arith.constant 0 : i32
    return %c0_i32, %c0_i32_0 : i32, i32
  }
  func.func @transform_4(%arg0: i32) -> (i32, i32) {
    %c0_i32 = arith.constant 0 : i32
    %c0_i32_0 = arith.constant 0 : i32
    %c0_i32_1 = arith.constant 0 : i32
    return %c0_i32, %c0_i32_0 : i32, i32
  }
  func.func @transform_5(%arg0: i32) -> (i32, i32) {
    %c0_i32 = arith.constant 0 : i32
    %c0_i32_0 = arith.constant 0 : i32
    return %arg0, %c0_i32 : i32, i32
  }
}

</mosaic_0001>

<llo_original>
// kernel: tpu_custom_call.1
$region0: #{tpu_custom_call.1}
  #allocation0 [shape = 'u32[]', space=smem, size = 0x4, offset = 0x4, fixed_abs, tag = 'smem constant byte address 0x4 - core index']
  #allocation1 [shape = 'u32[144,128]{1,0:T(1,128)}', space=vmem, size = 0x12000, scoped, tag = 'internal scratch']
  %s0 = inlined_call_operand.hbm [shape: f32[16,8,512], index: 0, kind: input, shape index: {}]
  %s1 = inlined_call_operand.hbm [shape: f32[512,384], index: 1, kind: input, shape index: {}]
  %s2 = inlined_call_operand.vmem [shape: f32[1,384], index: 2, kind: input, shape index: {}]
  %s3 = inlined_call_operand.vmem [shape: f32[1,128], index: 3, kind: input, shape index: {}]
  %s4 = inlined_call_operand.vmem [shape: f32[1,128], index: 4, kind: input, shape index: {}]
  %s5 = inlined_call_operand.hbm [shape: f32[16,128], index: 5, kind: output, shape index: {}]
  %s6 = sld [smem:[#allocation0]]
  $region61: #{tpu_custom_call.1} parent=0
    _
  %s8 = ssub.s32 1, %s6
  %s9 = scalar_select 0, %s8, %s6
  $region1: #{tpu_custom_call.1} parent=0
    #allocation2 [shape = 'u8[262144]{0}', space=vmem, size = 0x40000, scoped, tag = 'input window, operand 0']
    #allocation3 [shape = 's32[2]{0}', space=sflag, size = 0x8, scoped, tag = 'scoped memory for tpu_custom_call.1']
    #allocation4 [shape = 's32[2]{0}', space=sflag, size = 0x8, scoped, tag = 'scoped memory for tpu_custom_call.1']
    #allocation5 [shape = 'u8[786432]{0}', space=vmem, size = 0xc0000, scoped, tag = 'input window, operand 1, single buffered']
    #allocation6 [shape = 's32[1]{0}', space=sflag, size = 0x4, scoped, tag = 'scoped memory for tpu_custom_call.1']
    #allocation7 [shape = 'u8[8192]{0}', space=vmem, size = 0x2000, scoped, tag = 'output window, operand 0']
    %10 = vsyncpa [#allocation3], 0
    %s11 = scalar_lea.sflag [#allocation3], 1
    %12 = vsyncpa %s11, 0
    %13 = vsyncpa [#allocation6], 0
    %14 = vsyncpa [#allocation4], 0
    %s15 = scalar_lea.sflag [#allocation4], 1
    %16 = vsyncpa %s15, 0
    loop: start=0, step=1, limit=4
    $region2: #{tpu_custom_call.1} parent=1 // loop_pre_header
      _
    $region3: #{tpu_custom_call.1} parent=1 // loop_header
      %s18 = sphi 0, %s22
      %p19 = scmp.ge.s32.totalorder %s18, 4
      %s28 = sphi 0, %s30
      %s31 = sphi 0, %s28
      %s32 = sphi 0, %s31
      %s48 = sphi 0, %s32
      %s52 = sphi 0, %s52
      %s54 = sphi 0, %s52
      %s55 = sphi 0, %s54
      %s69 = sphi 0, %s55
      %s73 = sphi 0, %s73
      %s75 = sphi 0, %s73
      %s76 = sphi 0, %s75
      %s90 = sphi 0, %s76
      %s94 = sphi 0, %s94
      %s96 = sphi 0, %s94
      %s97 = sphi 0, %s96
      %s111 = sphi 0, %s97
      %s115 = sphi 0, %s115
      %s117 = sphi 0, %s115
      %s118 = sphi 0, %s117
      %s132 = sphi 0, %s118
      %s138 = sphi 0, %s140
      %s141 = sphi 0, %s138
      %s142 = sphi 0, %s141
      %s158 = sphi 0, %s142
    $region4: #{tpu_custom_call.1} parent=1 // loop_header_branch
      %21 = sbr.rel (%p19) target = $region8
    $region5: #{tpu_custom_call.1} parent=1 // loop_body
      %s23 = ssub.s32 %s18, 1
      %s24 = ssub.s32 %s18, 2
      %s25 = sadd.s32 %s18, 1
      %s26 = ssub.s32 %s18, %s25
      %p27 = scmp.eq.s32.totalorder %s26, 0
      %s29 = sadd.s32 %s28, 1
      %s30 = scalar_select %p27, %s28, %s29
      %p33 = pneg %p27
      %p34 = scmp.eq.s32.totalorder %s18, 1
      %p35 = por %p33, %p34
      %p36 = scmp.ne.s32.totalorder %s28, %s31
      %p37 = scmp.eq.s32.totalorder %s18, 0
      %p38 = por %p36, %p37
      %p39 = scmp.ne.s32.totalorder %s28, %s31
      %p40 = scmp.eq.s32.totalorder %s23, 1
      %p41 = por %p39, %p40
      %p42 = scmp.ne.s32.totalorder %s31, %s32
      %p43 = scmp.eq.s32.totalorder %s23, 0
      %p44 = por %p42, %p43
      %p45 = scmp.ne.s32.totalorder %s31, %s32
      %p46 = scmp.eq.s32.totalorder %s24, 1
      %p47 = por %p45, %p46
      %p49 = scmp.ne.s32.totalorder %s32, %s48
      %p50 = scmp.eq.s32.totalorder %s24, 0
      %p51 = por %p49, %p50
      %s53 = sadd.s32 %s52, 1
      %p56 = scmp.eq.s32.totalorder %s18, 1
      %p57 = scmp.ne.s32.totalorder %s52, %s54
      %p58 = scmp.eq.s32.totalorder %s18, 0
      %p59 = por %p57, %p58
      %p60 = scmp.ne.s32.totalorder %s52, %s54
      %p61 = scmp.eq.s32.totalorder %s23, 1
      %p62 = por %p60, %p61
      %p63 = scmp.ne.s32.totalorder %s54, %s55
      %p64 = scmp.eq.s32.totalorder %s23, 0
      %p65 = por %p63, %p64
      %p66 = scmp.ne.s32.totalorder %s54, %s55
      %p67 = scmp.eq.s32.totalorder %s24, 1
      %p68 = por %p66, %p67
      %p70 = scmp.ne.s32.totalorder %s55, %s69
      %p71 = scmp.eq.s32.totalorder %s24, 0
      %p72 = por %p70, %p71
      %s74 = sadd.s32 %s73, 1
      %p77 = scmp.eq.s32.totalorder %s18, 1
      %p78 = scmp.ne.s32.totalorder %s73, %s75
      %p79 = scmp.eq.s32.totalorder %s18, 0
      %p80 = por %p78, %p79
      %p81 = scmp.ne.s32.totalorder %s73, %s75
      %p82 = scmp.eq.s32.totalorder %s23, 1
      %p83 = por %p81, %p82
      %p84 = scmp.ne.s32.totalorder %s75, %s76
      %p85 = scmp.eq.s32.totalorder %s23, 0
      %p86 = por %p84, %p85
      %p87 = scmp.ne.s32.totalorder %s75, %s76
      %p88 = scmp.eq.s32.totalorder %s24, 1
      %p89 = por %p87, %p88
      %p91 = scmp.ne.s32.totalorder %s76, %s90
      %p92 = scmp.eq.s32.totalorder %s24, 0
      %p93 = por %p91, %p92
      %s95 = sadd.s32 %s94, 1
      %p98 = scmp.eq.s32.totalorder %s18, 1
      %p99 = scmp.ne.s32.totalorder %s94, %s96
      %p100 = scmp.eq.s32.totalorder %s18, 0
      %p101 = por %p99, %p100
      %p102 = scmp.ne.s32.totalorder %s94, %s96
      %p103 = scmp.eq.s32.totalorder %s23, 1
      %p104 = por %p102, %p103
      %p105 = scmp.ne.s32.totalorder %s96, %s97
      %p106 = scmp.eq.s32.totalorder %s23, 0
      %p107 = por %p105, %p106
      %p108 = scmp.ne.s32.totalorder %s96, %s97
      %p109 = scmp.eq.s32.totalorder %s24, 1
      %p110 = por %p108, %p109
      %p112 = scmp.ne.s32.totalorder %s97, %s111
      %p113 = scmp.eq.s32.totalorder %s24, 0
      %p114 = por %p112, %p113
      %s116 = sadd.s32 %s115, 1
      %p119 = scmp.eq.s32.totalorder %s18, 1
      %p120 = scmp.ne.s32.totalorder %s115, %s117
      %p121 = scmp.eq.s32.totalorder %s18, 0
      %p122 = por %p120, %p121
      %p123 = scmp.ne.s32.totalorder %s115, %s117
      %p124 = scmp.eq.s32.totalorder %s23, 1
      %p125 = por %p123, %p124
      %p126 = scmp.ne.s32.totalorder %s117, %s118
      %p127 = scmp.eq.s32.totalorder %s23, 0
      %p128 = por %p126, %p127
      %p129 = scmp.ne.s32.totalorder %s117, %s118
      %p130 = scmp.eq.s32.totalorder %s24, 1
      %p131 = por %p129, %p130
      %p133 = scmp.ne.s32.totalorder %s118, %s132
      %p134 = scmp.eq.s32.totalorder %s24, 0
      %p135 = por %p133, %p134
      %s136 = ssub.s32 %s18, %s25
      %p137 = scmp.eq.s32.totalorder %s136, 0
      %s139 = sadd.s32 %s138, 1
      %s140 = scalar_select %p137, %s138, %s139
      %p143 = pneg %p137
      %p144 = scmp.eq.s32.totalorder %s18, 1
      %p145 = por %p143, %p144
      %p146 = scmp.ne.s32.totalorder %s138, %s141
      %p147 = scmp.eq.s32.totalorder %s18, 0
      %p148 = por %p146, %p147
      %p149 = scmp.ne.s32.totalorder %s138, %s141
      %p150 = scmp.eq.s32.totalorder %s23, 1
      %p151 = por %p149, %p150
      %p152 = scmp.ne.s32.totalorder %s141, %s142
      %p153 = scmp.eq.s32.totalorder %s23, 0
      %p154 = por %p152, %p153
      %p155 = scmp.ne.s32.totalorder %s141, %s142
      %p156 = scmp.eq.s32.totalorder %s24, 1
      %p157 = por %p155, %p156
      %p159 = scmp.ne.s32.totalorder %s142, %s158
      %p160 = scmp.eq.s32.totalorder %s24, 0
      %p161 = por %p159, %p160
      %p162 = scmp.le.s32.totalorder 1, %s18
      %p163 = scmp.lt.s32.totalorder %s18, 3
      %p164 = pnand %p162, %p163
      %p165 = pneg %p164
      // Predicated region
      $region9: #{tpu_custom_call.1} parent=5 // pred_check
        _
      $region10: #{tpu_custom_call.1} parent=5 // pred_check_branch
        %167 = sbr.rel (%p164) target = $region12
      $region11: #{tpu_custom_call.1} parent=5 // pred_region
        %s168 = ssub.s32 %s18, 1
        // Predicated region
        $region13: #{tpu_custom_call.1} parent=11 // pred_check
          %p169 = pneg %p65
        $region14: #{tpu_custom_call.1} parent=11 // pred_check_branch
          %171 = sbr.rel (%p169) target = $region16
        $region15: #{tpu_custom_call.1} parent=11 // pred_region
          %s173 = ssub.s32 24576, 24576
          %174 = vsyncadd [#allocation6], %s173
          %s175 = sshll.u32 [#allocation5], 4
          %s176 = int_to_ptr.vmem [resolvable:$true] %s175
          %181 = dma.hbm_to_vmem [thread:$0]  %s1, 24576, %s176, [#allocation6], 384, 384, 24
        $region16: #{tpu_custom_call.1} parent=11 // pred_fallthru
          _
        // Predicated region
        $region17: #{tpu_custom_call.1} parent=11 // pred_check
          %p182 = pneg %p86
        $region18: #{tpu_custom_call.1} parent=11 // pred_check_branch
          %184 = sbr.rel (%p182) target = $region20
        $region19: #{tpu_custom_call.1} parent=11 // pred_region
          _
        $region20: #{tpu_custom_call.1} parent=11 // pred_fallthru
          _
        // Predicated region
        $region21: #{tpu_custom_call.1} parent=11 // pred_check
          %p185 = pneg %p107
        $region22: #{tpu_custom_call.1} parent=11 // pred_check_branch
          %187 = sbr.rel (%p185) target = $region24
        $region23: #{tpu_custom_call.1} parent=11 // pred_region
          _
        $region24: #{tpu_custom_call.1} parent=11 // pred_fallthru
          _
        // Predicated region
        $region25: #{tpu_custom_call.1} parent=11 // pred_check
          %p188 = pneg %p128
        $region26: #{tpu_custom_call.1} parent=11 // pred_check_branch
          %190 = sbr.rel (%p188) target = $region28
        $region27: #{tpu_custom_call.1} parent=11 // pred_region
          _
        $region28: #{tpu_custom_call.1} parent=11 // pred_fallthru
          _
      $region12: #{tpu_custom_call.1} parent=5 // pred_fallthru
        _
      %p191 = scmp.lt.s32.totalorder %s18, 2
      // Predicated region
      $region29: #{tpu_custom_call.1} parent=5 // pred_check
        %p192 = pneg %p191
      $region30: #{tpu_custom_call.1} parent=5 // pred_check_branch
        %194 = sbr.rel (%p192) target = $region32
      $region31: #{tpu_custom_call.1} parent=5 // pred_region
        // Predicated region
        $region33: #{tpu_custom_call.1} parent=31 // pred_check
          %p195 = pneg %p38
        $region34: #{tpu_custom_call.1} parent=31 // pred_check_branch
          %197 = sbr.rel (%p195) target = $region36
        $region35: #{tpu_custom_call.1} parent=31 // pred_region
          %s198 = sand.u32 %s28, 1
          %s199 = scalar_lea.sflag [#allocation3], %s198
          %s200 = sand.u32 %s28, 1
          %s201 = smul.addr %s200, 256
          %s202 = scalar_lea.vmem [#allocation2], %s201
          %s203 = smul.u32 8, %s18
          %s205 = ssub.s32 4096, 4096
          %206 = vsyncadd %s199, %s205
          %s207 = smul.addr %s203, 4
          %s208 = smul.addr %s207, 128
          %s209 = scalar_lea.hbm %s0, %s208
          %s210 = sshll.u32 %s202, 4
          %s211 = int_to_ptr.vmem [resolvable:$true] %s210
          %216 = dma.hbm_to_vmem [thread:$0]  %s209, 4096, %s211, %s199, 512, 512, 32
        $region36: #{tpu_custom_call.1} parent=31 // pred_fallthru
          _
      $region32: #{tpu_custom_call.1} parent=5 // pred_fallthru
        _
      %p217 = scmp.le.s32.totalorder 1, %s18
      %p218 = scmp.lt.s32.totalorder %s18, 3
      %p219 = pnand %p217, %p218
      %p220 = pneg %p219
      // Predicated region
      $region37: #{tpu_custom_call.1} parent=5 // pred_check
        _
      $region38: #{tpu_custom_call.1} parent=5 // pred_check_branch
        %222 = sbr.rel (%p219) target = $region40
      $region39: #{tpu_custom_call.1} parent=5 // pred_region
        %s223 = ssub.s32 %s18, 1
        %s224 = sand.u32 %s31, 1
        %s225 = scalar_lea.sflag [#allocation3], %s224
        %s226 = sand.u32 %s31, 1
        %s227 = smul.addr %s226, 256
        %s228 = scalar_lea.vmem [#allocation2], %s227
        // Predicated region
        $region41: #{tpu_custom_call.1} parent=39 // pred_check
          %p229 = pneg %p44
        $region42: #{tpu_custom_call.1} parent=39 // pred_check_branch
          %231 = sbr.rel (%p229) target = $region44
        $region43: #{tpu_custom_call.1} parent=39 // pred_region
          %232 = dma.done %s225, 4096
        $region44: #{tpu_custom_call.1} parent=39 // pred_fallthru
          _
        // Predicated region
        $region45: #{tpu_custom_call.1} parent=39 // pred_check
          %p233 = pneg %p65
        $region46: #{tpu_custom_call.1} parent=39 // pred_check_branch
          %235 = sbr.rel (%p233) target = $region48
        $region47: #{tpu_custom_call.1} parent=39 // pred_region
          %236 = dma.done [#allocation6], 24576
        $region48: #{tpu_custom_call.1} parent=39 // pred_fallthru
          _
        %s237 = sand.u32 %s31, 1
        %s238 = scalar_lea.sflag [#allocation3], %s237
        %s239 = sand.u32 %s31, 1
        %s240 = smul.addr %s239, 256
        %s241 = scalar_lea.vmem [#allocation2], %s240
        %p242 = pneg %p44
        %p243 = pneg %p41
        %p244 = pneg %p65
        %p245 = pneg %p62
        %p246 = pneg %p86
        %p247 = pneg %p83
        %p248 = pneg %p107
        %p249 = pneg %p104
        %p250 = pneg %p128
        %p251 = pneg %p125
        %p252 = pneg %p154
        %p253 = pneg %p151
        %s254 = sand.u32 %s141, 1
        %s255 = scalar_lea.sflag [#allocation4], %s254
        %s256 = sand.u32 %s141, 1
        %s257 = smul.addr %s256, 8
        %s258 = scalar_lea.vmem [#allocation7], %s257
        %s259 = smul.u32 8, %s23
        %v260 = vld [vmem:[%s228] sm:$0xff]
        %v261 = vld [vmem:[%s228 + $0x8] sm:$0xff]
        %v262 = vld [vmem:[%s228 + $0x10] sm:$0xff]
        %v263 = vld [vmem:[%s228 + $0x18] sm:$0xff]
        %v264 = vld [vmem:[%s228 + $0x20] sm:$0xff]
        %v265 = vld [vmem:[%s228 + $0x28] sm:$0xff]
        %v266 = vld [vmem:[%s228 + $0x30] sm:$0xff]
        %v267 = vld [vmem:[%s228 + $0x38] sm:$0xff]
        %v268 = vld [vmem:[%s228 + $0x40] sm:$0xff]
        %v269 = vld [vmem:[%s228 + $0x48] sm:$0xff]
        %v270 = vld [vmem:[%s228 + $0x50] sm:$0xff]
        %v271 = vld [vmem:[%s228 + $0x58] sm:$0xff]
        %v272 = vld [vmem:[%s228 + $0x60] sm:$0xff]
        %v273 = vld [vmem:[%s228 + $0x68] sm:$0xff]
        %v274 = vld [vmem:[%s228 + $0x70] sm:$0xff]
        %v275 = vld [vmem:[%s228 + $0x78] sm:$0xff]
        %v276 = vld [vmem:[%s228 + $0x80] sm:$0xff]
        %v277 = vld [vmem:[%s228 + $0x88] sm:$0xff]
        %v278 = vld [vmem:[%s228 + $0x90] sm:$0xff]
        %v279 = vld [vmem:[%s228 + $0x98] sm:$0xff]
        %v280 = vld [vmem:[%s228 + $0xa0] sm:$0xff]
        %v281 = vld [vmem:[%s228 + $0xa8] sm:$0xff]
        %v282 = vld [vmem:[%s228 + $0xb0] sm:$0xff]
        %v283 = vld [vmem:[%s228 + $0xb8] sm:$0xff]
        %v284 = vld [vmem:[%s228 + $0xc0] sm:$0xff]
        %v285 = vld [vmem:[%s228 + $0xc8] sm:$0xff]
        %v286 = vld [vmem:[%s228 + $0xd0] sm:$0xff]
        %v287 = vld [vmem:[%s228 + $0xd8] sm:$0xff]
        %v288 = vld [vmem:[%s228 + $0xe0] sm:$0xff]
        %v289 = vld [vmem:[%s228 + $0xe8] sm:$0xff]
        %v290 = vld [vmem:[%s228 + $0xf0] sm:$0xff]
        %v291 = vld [vmem:[%s228 + $0xf8] sm:$0xff]
        %v292 = vld [vmem:[#allocation5] sm:$0xff]
        %v293 = vld [vmem:[#allocation5 + $0x8] sm:$0xff]
        %v294 = vld [vmem:[#allocation5 + $0x10] sm:$0xff]
        %v295 = vld [vmem:[#allocation5 + $0x18] sm:$0xff]
        %v296 = vld [vmem:[#allocation5 + $0x20] sm:$0xff]
        %v297 = vld [vmem:[#allocation5 + $0x28] sm:$0xff]
        %v298 = vld [vmem:[#allocation5 + $0x30] sm:$0xff]
        %v299 = vld [vmem:[#allocation5 + $0x38] sm:$0xff]
        %v300 = vld [vmem:[#allocation5 + $0x40] sm:$0xff]
        %v301 = vld [vmem:[#allocation5 + $0x48] sm:$0xff]
        %v302 = vld [vmem:[#allocation5 + $0x50] sm:$0xff]
        %v303 = vld [vmem:[#allocation5 + $0x58] sm:$0xff]
        %v304 = vld [vmem:[#allocation5 + $0x60] sm:$0xff]
        %v305 = vld [vmem:[#allocation5 + $0x68] sm:$0xff]
        %v306 = vld [vmem:[#allocation5 + $0x70] sm:$0xff]
        %v307 = vld [vmem:[#allocation5 + $0x78] sm:$0xff]
        %v308 = vld [vmem:[#allocation5 + $0x80] sm:$0xff]
        %v309 = vld [vmem:[#allocation5 + $0x88] sm:$0xff]
        %v310 = vld [vmem:[#allocation5 + $0x90] sm:$0xff]
        %v311 = vld [vmem:[#allocation5 + $0x98] sm:$0xff]
        %v312 = vld [vmem:[#allocation5 + $0xa0] sm:$0xff]
        %v313 = vld [vmem:[#allocation5 + $0xa8] sm:$0xff]
        %v314 = vld [vmem:[#allocation5 + $0xb0] sm:$0xff]
        %v315 = vld [vmem:[#allocation5 + $0xb8] sm:$0xff]
        %v316 = vld [vmem:[#allocation5 + $0xc0] sm:$0xff]
        %v317 = vld [vmem:[#allocation5 + $0xc8] sm:$0xff]
        %v318 = vld [vmem:[#allocation5 + $0xd0] sm:$0xff]
        %v319 = vld [vmem:[#allocation5 + $0xd8] sm:$0xff]
        %v320 = vld [vmem:[#allocation5 + $0xe0] sm:$0xff]
        %v321 = vld [vmem:[#allocation5 + $0xe8] sm:$0xff]
        %v322 = vld [vmem:[#allocation5 + $0xf0] sm:$0xff]
        %v323 = vld [vmem:[#allocation5 + $0xf8] sm:$0xff]
        %v324 = vld [vmem:[#allocation5 + $0x100] sm:$0xff]
        %v325 = vld [vmem:[#allocation5 + $0x108] sm:$0xff]
        %v326 = vld [vmem:[#allocation5 + $0x110] sm:$0xff]
        %v327 = vld [vmem:[#allocation5 + $0x118] sm:$0xff]
        %v328 = vld [vmem:[#allocation5 + $0x120] sm:$0xff]
        %v329 = vld [vmem:[#allocation5 + $0x128] sm:$0xff]
        %v330 = vld [vmem:[#allocation5 + $0x130] sm:$0xff]
        %v331 = vld [vmem:[#allocation5 + $0x138] sm:$0xff]
        %v332 = vld [vmem:[#allocation5 + $0x140] sm:$0xff]
        %v333 = vld [vmem:[#allocation5 + $0x148] sm:$0xff]
        %v334 = vld [vmem:[#allocation5 + $0x150] sm:$0xff]
        %v335 = vld [vmem:[#allocation5 + $0x158] sm:$0xff]
        %v336 = vld [vmem:[#allocation5 + $0x160] sm:$0xff]
        %v337 = vld [vmem:[#allocation5 + $0x168] sm:$0xff]
        %v338 = vld [vmem:[#allocation5 + $0x170] sm:$0xff]
        %v339 = vld [vmem:[#allocation5 + $0x178] sm:$0xff]
        %v340 = vld [vmem:[#allocation5 + $0x180] sm:$0xff]
        %v341 = vld [vmem:[#allocation5 + $0x188] sm:$0xff]
        %v342 = vld [vmem:[#allocation5 + $0x190] sm:$0xff]
        %v343 = vld [vmem:[#allocation5 + $0x198] sm:$0xff]
        %v344 = vld [vmem:[#allocation5 + $0x1a0] sm:$0xff]
        %v345 = vld [vmem:[#allocation5 + $0x1a8] sm:$0xff]
        %v346 = vld [vmem:[#allocation5 + $0x1b0] sm:$0xff]
        %v347 = vld [vmem:[#allocation5 + $0x1b8] sm:$0xff]
        %v348 = vld [vmem:[#allocation5 + $0x1c0] sm:$0xff]
        %v349 = vld [vmem:[#allocation5 + $0x1c8] sm:$0xff]
        %v350 = vld [vmem:[#allocation5 + $0x1d0] sm:$0xff]
        %v351 = vld [vmem:[#allocation5 + $0x1d8] sm:$0xff]
        %v352 = vld [vmem:[#allocation5 + $0x1e0] sm:$0xff]
        %v353 = vld [vmem:[#allocation5 + $0x1e8] sm:$0xff]
        %v354 = vld [vmem:[#allocation5 + $0x1f0] sm:$0xff]
        %v355 = vld [vmem:[#allocation5 + $0x1f8] sm:$0xff]
        %v356 = vld [vmem:[#allocation5 + $0x200] sm:$0xff]
        %v357 = vld [vmem:[#allocation5 + $0x208] sm:$0xff]
        %v358 = vld [vmem:[#allocation5 + $0x210] sm:$0xff]
        %v359 = vld [vmem:[#allocation5 + $0x218] sm:$0xff]
        %v360 = vld [vmem:[#allocation5 + $0x220] sm:$0xff]
        %v361 = vld [vmem:[#allocation5 + $0x228] sm:$0xff]
        %v362 = vld [vmem:[#allocation5 + $0x230] sm:$0xff]
        %v363 = vld [vmem:[#allocation5 + $0x238] sm:$0xff]
        %v364 = vld [vmem:[#allocation5 + $0x240] sm:$0xff]
        %v365 = vld [vmem:[#allocation5 + $0x248] sm:$0xff]
        %v366 = vld [vmem:[#allocation5 + $0x250] sm:$0xff]
        %v367 = vld [vmem:[#allocation5 + $0x258] sm:$0xff]
        %v368 = vld [vmem:[#allocation5 + $0x260] sm:$0xff]
        %v369 = vld [vmem:[#allocation5 + $0x268] sm:$0xff]
        %v370 = vld [vmem:[#allocation5 + $0x270] sm:$0xff]
        %v371 = vld [vmem:[#allocation5 + $0x278] sm:$0xff]
        %v372 = vld [vmem:[#allocation5 + $0x280] sm:$0xff]
        %v373 = vld [vmem:[#allocation5 + $0x288] sm:$0xff]
        %v374 = vld [vmem:[#allocation5 + $0x290] sm:$0xff]
        %v375 = vld [vmem:[#allocation5 + $0x298] sm:$0xff]
        %v376 = vld [vmem:[#allocation5 + $0x2a0] sm:$0xff]
        %v377 = vld [vmem:[#allocation5 + $0x2a8] sm:$0xff]
        %v378 = vld [vmem:[#allocation5 + $0x2b0] sm:$0xff]
        %v379 = vld [vmem:[#allocation5 + $0x2b8] sm:$0xff]
        %v380 = vld [vmem:[#allocation5 + $0x2c0] sm:$0xff]
        %v381 = vld [vmem:[#allocation5 + $0x2c8] sm:$0xff]
        %v382 = vld [vmem:[#allocation5 + $0x2d0] sm:$0xff]
        %v383 = vld [vmem:[#allocation5 + $0x2d8] sm:$0xff]
        %v384 = vld [vmem:[#allocation5 + $0x2e0] sm:$0xff]
        %v385 = vld [vmem:[#allocation5 + $0x2e8] sm:$0xff]
        %v386 = vld [vmem:[#allocation5 + $0x2f0] sm:$0xff]
        %v387 = vld [vmem:[#allocation5 + $0x2f8] sm:$0xff]
        %v388 = vld [vmem:[#allocation5 + $0x300] sm:$0xff]
        %v389 = vld [vmem:[#allocation5 + $0x308] sm:$0xff]
        %v390 = vld [vmem:[#allocation5 + $0x310] sm:$0xff]
        %v391 = vld [vmem:[#allocation5 + $0x318] sm:$0xff]
        %v392 = vld [vmem:[#allocation5 + $0x320] sm:$0xff]
        %v393 = vld [vmem:[#allocation5 + $0x328] sm:$0xff]
        %v394 = vld [vmem:[#allocation5 + $0x330] sm:$0xff]
        %v395 = vld [vmem:[#allocation5 + $0x338] sm:$0xff]
        %v396 = vld [vmem:[#allocation5 + $0x340] sm:$0xff]
        %v397 = vld [vmem:[#allocation5 + $0x348] sm:$0xff]
        %v398 = vld [vmem:[#allocation5 + $0x350] sm:$0xff]
        %v399 = vld [vmem:[#allocation5 + $0x358] sm:$0xff]
        %v400 = vld [vmem:[#allocation5 + $0x360] sm:$0xff]
        %v401 = vld [vmem:[#allocation5 + $0x368] sm:$0xff]
        %v402 = vld [vmem:[#allocation5 + $0x370] sm:$0xff]
        %v403 = vld [vmem:[#allocation5 + $0x378] sm:$0xff]
        %v404 = vld [vmem:[#allocation5 + $0x380] sm:$0xff]
        %v405 = vld [vmem:[#allocation5 + $0x388] sm:$0xff]
        %v406 = vld [vmem:[#allocation5 + $0x390] sm:$0xff]
        %v407 = vld [vmem:[#allocation5 + $0x398] sm:$0xff]
        %v408 = vld [vmem:[#allocation5 + $0x3a0] sm:$0xff]
        %v409 = vld [vmem:[#allocation5 + $0x3a8] sm:$0xff]
        %v410 = vld [vmem:[#allocation5 + $0x3b0] sm:$0xff]
        %v411 = vld [vmem:[#allocation5 + $0x3b8] sm:$0xff]
        %v412 = vld [vmem:[#allocation5 + $0x3c0] sm:$0xff]
        %v413 = vld [vmem:[#allocation5 + $0x3c8] sm:$0xff]
        %v414 = vld [vmem:[#allocation5 + $0x3d0] sm:$0xff]
        %v415 = vld [vmem:[#allocation5 + $0x3d8] sm:$0xff]
        %v416 = vld [vmem:[#allocation5 + $0x3e0] sm:$0xff]
        %v417 = vld [vmem:[#allocation5 + $0x3e8] sm:$0xff]
        %v418 = vld [vmem:[#allocation5 + $0x3f0] sm:$0xff]
        %v419 = vld [vmem:[#allocation5 + $0x3f8] sm:$0xff]
        %v420 = vld [vmem:[#allocation5 + $0x400] sm:$0xff]
        %v421 = vld [vmem:[#allocation5 + $0x408] sm:$0xff]
        %v422 = vld [vmem:[#allocation5 + $0x410] sm:$0xff]
        %v423 = vld [vmem:[#allocation5 + $0x418] sm:$0xff]
        %v424 = vld [vmem:[#allocation5 + $0x420] sm:$0xff]
        %v425 = vld [vmem:[#allocation5 + $0x428] sm:$0xff]
        %v426 = vld [vmem:[#allocation5 + $0x430] sm:$0xff]
        %v427 = vld [vmem:[#allocation5 + $0x438] sm:$0xff]
        %v428 = vld [vmem:[#allocation5 + $0x440] sm:$0xff]
        %v429 = vld [vmem:[#allocation5 + $0x448] sm:$0xff]
        %v430 = vld [vmem:[#allocation5 + $0x450] sm:$0xff]
        %v431 = vld [vmem:[#allocation5 + $0x458] sm:$0xff]
        %v432 = vld [vmem:[#allocation5 + $0x460] sm:$0xff]
        %v433 = vld [vmem:[#allocation5 + $0x468] sm:$0xff]
        %v434 = vld [vmem:[#allocation5 + $0x470] sm:$0xff]
        %v435 = vld [vmem:[#allocation5 + $0x478] sm:$0xff]
        %v436 = vld [vmem:[#allocation5 + $0x480] sm:$0xff]
        %v437 = vld [vmem:[#allocation5 + $0x488] sm:$0xff]
        %v438 = vld [vmem:[#allocation5 + $0x490] sm:$0xff]
        %v439 = vld [vmem:[#allocation5 + $0x498] sm:$0xff]
        %v440 = vld [vmem:[#allocation5 + $0x4a0] sm:$0xff]
        %v441 = vld [vmem:[#allocation5 + $0x4a8] sm:$0xff]
        %v442 = vld [vmem:[#allocation5 + $0x4b0] sm:$0xff]
        %v443 = vld [vmem:[#allocation5 + $0x4b8] sm:$0xff]
        %v444 = vld [vmem:[#allocation5 + $0x4c0] sm:$0xff]
        %v445 = vld [vmem:[#allocation5 + $0x4c8] sm:$0xff]
        %v446 = vld [vmem:[#allocation5 + $0x4d0] sm:$0xff]
        %v447 = vld [vmem:[#allocation5 + $0x4d8] sm:$0xff]
        %v448 = vld [vmem:[#allocation5 + $0x4e0] sm:$0xff]
        %v449 = vld [vmem:[#allocation5 + $0x4e8] sm:$0xff]
        %v450 = vld [vmem:[#allocation5 + $0x4f0] sm:$0xff]
        %v451 = vld [vmem:[#allocation5 + $0x4f8] sm:$0xff]
        %v452 = vld [vmem:[#allocation5 + $0x500] sm:$0xff]
        %v453 = vld [vmem:[#allocation5 + $0x508] sm:$0xff]
        %v454 = vld [vmem:[#allocation5 + $0x510] sm:$0xff]
        %v455 = vld [vmem:[#allocation5 + $0x518] sm:$0xff]
        %v456 = vld [vmem:[#allocation5 + $0x520] sm:$0xff]
        %v457 = vld [vmem:[#allocation5 + $0x528] sm:$0xff]
        %v458 = vld [vmem:[#allocation5 + $0x530] sm:$0xff]
        %v459 = vld [vmem:[#allocation5 + $0x538] sm:$0xff]
        %v460 = vld [vmem:[#allocation5 + $0x540] sm:$0xff]
        %v461 = vld [vmem:[#allocation5 + $0x548] sm:$0xff]
        %v462 = vld [vmem:[#allocation5 + $0x550] sm:$0xff]
        %v463 = vld [vmem:[#allocation5 + $0x558] sm:$0xff]
        %v464 = vld [vmem:[#allocation5 + $0x560] sm:$0xff]
        %v465 = vld [vmem:[#allocation5 + $0x568] sm:$0xff]
        %v466 = vld [vmem:[#allocation5 + $0x570] sm:$0xff]
        %v467 = vld [vmem:[#allocation5 + $0x578] sm:$0xff]
        %v468 = vld [vmem:[#allocation5 + $0x580] sm:$0xff]
        %v469 = vld [vmem:[#allocation5 + $0x588] sm:$0xff]
        %v470 = vld [vmem:[#allocation5 + $0x590] sm:$0xff]
        %v471 = vld [vmem:[#allocation5 + $0x598] sm:$0xff]
        %v472 = vld [vmem:[#allocation5 + $0x5a0] sm:$0xff]
        %v473 = vld [vmem:[#allocation5 + $0x5a8] sm:$0xff]
        %v474 = vld [vmem:[#allocation5 + $0x5b0] sm:$0xff]
        %v475 = vld [vmem:[#allocation5 + $0x5b8] sm:$0xff]
        %v476 = vld [vmem:[#allocation5 + $0x5c0] sm:$0xff]
        %v477 = vld [vmem:[#allocation5 + $0x5c8] sm:$0xff]
        %v478 = vld [vmem:[#allocation5 + $0x5d0] sm:$0xff]
        %v479 = vld [vmem:[#allocation5 + $0x5d8] sm:$0xff]
        %v480 = vld [vmem:[#allocation5 + $0x5e0] sm:$0xff]
        %v481 = vld [vmem:[#allocation5 + $0x5e8] sm:$0xff]
        %v482 = vld [vmem:[#allocation5 + $0x5f0] sm:$0xff]
        %v483 = vld [vmem:[#allocation5 + $0x5f8] sm:$0xff]
        %v484 = vld [vmem:[%s2] sm:$0x7]
        %v486 = vlaneseq
        %v487 = vshrl.u32 %v486, 7
        %v488 = vsub.s32 0, %v487
        %v489 = vrot.slane %v484, %v488
        %v490 = vlaneseq
        %v491 = vshrl.u32 %v490, 7
        %v492 = vsub.s32 1, %v491
        %v493 = vrot.slane %v484, %v492
        %v494 = vlaneseq
        %v495 = vshrl.u32 %v494, 7
        %v496 = vsub.s32 2, %v495
        %v497 = vrot.slane %v484, %v496
        %501 = vmatprep.subr.mxu0 %v293
        %502 = vmatpush1.msra.mxu0 %v292
        %503 = vmatprep.subr.mxu0 %v296
        %504 = vmatpush1.msra.mxu0 %v295
        %505 = vmatprep.subr.mxu0 %v299
        %506 = vmatpush1.msra.mxu0 %v298
        %507 = vmatprep.subr.mxu0 %v302
        %508 = vmatpush1.msra.mxu0 %v301
        %509 = vmatprep.subr.mxu0 %v305
        %510 = vmatpush1.msra.mxu0 %v304
        %511 = vmatprep.subr.mxu0 %v308
        %512 = vmatpush1.msra.mxu0 %v307
        %513 = vmatprep.subr.mxu0 %v311
        %514 = vmatpush1.msra.mxu0 %v310
        %515 = vmatprep.subr.mxu0 %v314
        %516 = vmatpush1.msra.mxu0 %v313
        %517 = vmatprep.subr.mxu0 %v317
        %518 = vmatpush1.msra.mxu0 %v316
        %519 = vmatprep.subr.mxu0 %v320
        %520 = vmatpush1.msra.mxu0 %v319
        %521 = vmatprep.subr.mxu0 %v323
        %522 = vmatpush1.msra.mxu0 %v322
        %523 = vmatprep.subr.mxu0 %v326
        %524 = vmatpush1.msra.mxu0 %v325
        %525 = vmatprep.subr.mxu0 %v329
        %526 = vmatpush1.msra.mxu0 %v328
        %527 = vmatprep.subr.mxu0 %v332
        %528 = vmatpush1.msra.mxu0 %v331
        %529 = vmatprep.subr.mxu0 %v335
        %530 = vmatpush1.msra.mxu0 %v334
        %531 = vmatprep.subr.mxu0 %v338
        %532 = vmatpush1.msra.mxu0 %v337
        %533 = vmatprep.subr.mxu0 %v341
        %534 = vmatpush1.msra.mxu0 %v340
        %535 = vmatprep.subr.mxu0 %v344
        %536 = vmatpush1.msra.mxu0 %v343
        %537 = vmatprep.subr.mxu0 %v347
        %538 = vmatpush1.msra.mxu0 %v346
        %539 = vmatprep.subr.mxu0 %v350
        %540 = vmatpush1.msra.mxu0 %v349
        %541 = vmatprep.subr.mxu0 %v353
        %542 = vmatpush1.msra.mxu0 %v352
        %543 = vmatprep.subr.mxu0 %v356
        %544 = vmatpush1.msra.mxu0 %v355
        %545 = vmatprep.subr.mxu0 %v359
        %546 = vmatpush1.msra.mxu0 %v358
        %547 = vmatprep.subr.mxu0 %v362
        %548 = vmatpush1.msra.mxu0 %v361
        %549 = vmatprep.subr.mxu0 %v365
        %550 = vmatpush1.msra.mxu0 %v364
        %551 = vmatprep.subr.mxu0 %v368
        %552 = vmatpush1.msra.mxu0 %v367
        %553 = vmatprep.subr.mxu0 %v371
        %554 = vmatpush1.msra.mxu0 %v370
        %555 = vmatprep.subr.mxu0 %v374
        %556 = vmatpush1.msra.mxu0 %v373
        %557 = vmatprep.subr.mxu0 %v377
        %558 = vmatpush1.msra.mxu0 %v376
        %559 = vmatprep.subr.mxu0 %v380
        %560 = vmatpush1.msra.mxu0 %v379
        %561 = vmatprep.subr.mxu0 %v383
        %562 = vmatpush1.msra.mxu0 %v382
        %563 = vmatprep.subr.mxu0 %v386
        %564 = vmatpush1.msra.mxu0 %v385
        %565 = vmatprep.mubr.f32.mxu0 %v261
        %566 = vmatmul.mubr.f32.gmra.mrb[0].mxu0 %v260
        %v567 = vpop.f32.mrb[0].mxu0
        %v568 = vadd.f32 %v489, %v567
        %v569 = vpop.f32.mrb[0].mxu0
        %v570 = vadd.f32 %v493, %v569
        %571 = vmatprep.mubr.f32.mxu0 %v265
        %572 = vmatmul.mubr.f32.gmra.mrb[0].mxu0 %v264
        %v573 = vpop.f32.mrb[0].mxu0
        %v574 = vadd.f32 %v489, %v573
        %v575 = vpop.f32.mrb[0].mxu0
        %v576 = vadd.f32 %v493, %v575
        %577 = vmatprep.mubr.f32.mxu0 %v269
        %578 = vmatmul.mubr.f32.gmra.mrb[0].mxu0 %v268
        %v579 = vpop.f32.mrb[0].mxu0
        %v580 = vadd.f32 %v489, %v579
        %v581 = vpop.f32.mrb[0].mxu0
        %v582 = vadd.f32 %v493, %v581
        %583 = vmatprep.mubr.f32.mxu0 %v273
        %584 = vmatmul.mubr.f32.gmra.mrb[0].mxu0 %v272
        %v585 = vpop.f32.mrb[0].mxu0
        %v586 = vadd.f32 %v489, %v585
        %v587 = vpop.f32.mrb[0].mxu0
        %v588 = vadd.f32 %v493, %v587
        %589 = vmatprep.mubr.f32.mxu0 %v277
        %590 = vmatmul.mubr.f32.gmra.mrb[0].mxu0 %v276
        %v591 = vpop.f32.mrb[0].mxu0
        %v592 = vadd.f32 %v489, %v591
        %v593 = vpop.f32.mrb[0].mxu0
        %v594 = vadd.f32 %v493, %v593
        %595 = vmatprep.mubr.f32.mxu0 %v281
        %596 = vmatmul.mubr.f32.gmra.mrb[0].mxu0 %v280
        %v597 = vpop.f32.mrb[0].mxu0
        %v598 = vadd.f32 %v489, %v597
        %v599 = vpop.f32.mrb[0].mxu0
        %v600 = vadd.f32 %v493, %v599
        %601 = vmatprep.mubr.f32.mxu0 %v285
        %602 = vmatmul.mubr.f32.gmra.mrb[0].mxu0 %v284
        %v603 = vpop.f32.mrb[0].mxu0
        %v604 = vadd.f32 %v489, %v603
        %v605 = vpop.f32.mrb[0].mxu0
        %v606 = vadd.f32 %v493, %v605
        %607 = vmatprep.mubr.f32.mxu0 %v289
        %608 = vmatmul.mubr.f32.gmra.mrb[0].mxu0 %v288
        %v609 = vpop.f32.mrb[0].mxu0
        %v610 = vadd.f32 %v489, %v609
        %v611 = vpop.f32.mrb[0].mxu0
        %v612 = vadd.f32 %v493, %v611
        %613 = vdwg.mxu0
        %614 = vmatprep.subr.mxu0 %v389
        %615 = vmatpush1.msra.mxu0 %v388
        %616 = vmatprep.subr.mxu0 %v392
        %617 = vmatpush1.msra.mxu0 %v391
        %618 = vmatprep.subr.mxu0 %v395
        %619 = vmatpush1.msra.mxu0 %v394
        %620 = vmatprep.subr.mxu0 %v398
        %621 = vmatpush1.msra.mxu0 %v397
        %622 = vmatprep.subr.mxu0 %v401
        %623 = vmatpush1.msra.mxu0 %v400
        %624 = vmatprep.subr.mxu0 %v404
        %625 = vmatpush1.msra.mxu0 %v403
        %626 = vmatprep.subr.mxu0 %v407
        %627 = vmatpush1.msra.mxu0 %v406
        %628 = vmatprep.subr.mxu0 %v410
        %629 = vmatpush1.msra.mxu0 %v409
        %630 = vmatprep.subr.mxu0 %v413
        %631 = vmatpush1.msra.mxu0 %v412
        %632 = vmatprep.subr.mxu0 %v416
        %633 = vmatpush1.msra.mxu0 %v415
        %634 = vmatprep.subr.mxu0 %v419
        %635 = vmatpush1.msra.mxu0 %v418
        %636 = vmatprep.subr.mxu0 %v422
        %637 = vmatpush1.msra.mxu0 %v421
        %638 = vmatprep.subr.mxu0 %v425
        %639 = vmatpush1.msra.mxu0 %v424
        %640 = vmatprep.subr.mxu0 %v428
        %641 = vmatpush1.msra.mxu0 %v427
        %642 = vmatprep.subr.mxu0 %v431
        %643 = vmatpush1.msra.mxu0 %v430
        %644 = vmatprep.subr.mxu0 %v434
        %645 = vmatpush1.msra.mxu0 %v433
        %646 = vmatprep.subr.mxu0 %v437
        %647 = vmatpush1.msra.mxu0 %v436
        %648 = vmatprep.subr.mxu0 %v440
        %649 = vmatpush1.msra.mxu0 %v439
        %650 = vmatprep.subr.mxu0 %v443
        %651 = vmatpush1.msra.mxu0 %v442
        %652 = vmatprep.subr.mxu0 %v446
        %653 = vmatpush1.msra.mxu0 %v445
        %654 = vmatprep.subr.mxu0 %v449
        %655 = vmatpush1.msra.mxu0 %v448
        %656 = vmatprep.subr.mxu0 %v452
        %657 = vmatpush1.msra.mxu0 %v451
        %658 = vmatprep.subr.mxu0 %v455
        %659 = vmatpush1.msra.mxu0 %v454
        %660 = vmatprep.subr.mxu0 %v458
        %661 = vmatpush1.msra.mxu0 %v457
        %662 = vmatprep.subr.mxu0 %v461
        %663 = vmatpush1.msra.mxu0 %v460
        %664 = vmatprep.subr.mxu0 %v464
        %665 = vmatpush1.msra.mxu0 %v463
        %666 = vmatprep.subr.mxu0 %v467
        %667 = vmatpush1.msra.mxu0 %v466
        %668 = vmatprep.subr.mxu0 %v470
        %669 = vmatpush1.msra.mxu0 %v469
        %670 = vmatprep.subr.mxu0 %v473
        %671 = vmatpush1.msra.mxu0 %v472
        %672 = vmatprep.subr.mxu0 %v476
        %673 = vmatpush1.msra.mxu0 %v475
        %674 = vmatprep.subr.mxu0 %v479
        %675 = vmatpush1.msra.mxu0 %v478
        %676 = vmatprep.subr.mxu0 %v482
        %677 = vmatpush1.msra.mxu0 %v481
        %678 = vmatprep.mubr.f32.mxu0 %v263
        %679 = vmatmul.mubr.f32.gmra.mrb[0].mxu0 %v262
        %v680 = vpop.f32.mrb[0].mxu0
        %v681 = vadd.f32 %v568, %v680
        %v682 = vpop.f32.mrb[0].mxu0
        %v683 = vadd.f32 %v570, %v682
        %684 = vmatprep.mubr.f32.mxu0 %v267
        %685 = vmatmul.mubr.f32.gmra.mrb[0].mxu0 %v266
        %v686 = vpop.f32.mrb[0].mxu0
        %v687 = vadd.f32 %v574, %v686
        %v688 = vpop.f32.mrb[0].mxu0
        %v689 = vadd.f32 %v576, %v688
        %690 = vmatprep.mubr.f32.mxu0 %v271
        %691 = vmatmul.mubr.f32.gmra.mrb[0].mxu0 %v270
        %v692 = vpop.f32.mrb[0].mxu0
        %v693 = vadd.f32 %v580, %v692
        %v694 = vpop.f32.mrb[0].mxu0
        %v695 = vadd.f32 %v582, %v694
        %696 = vmatprep.mubr.f32.mxu0 %v275
        %697 = vmatmul.mubr.f32.gmra.mrb[0].mxu0 %v274
        %v698 = vpop.f32.mrb[0].mxu0
        %v699 = vadd.f32 %v586, %v698
        %v700 = vpop.f32.mrb[0].mxu0
        %v701 = vadd.f32 %v588, %v700
        %702 = vmatprep.mubr.f32.mxu0 %v279
        %703 = vmatmul.mubr.f32.gmra.mrb[0].mxu0 %v278
        %v704 = vpop.f32.mrb[0].mxu0
        %v705 = vadd.f32 %v592, %v704
        %v706 = vpop.f32.mrb[0].mxu0
        %v707 = vadd.f32 %v594, %v706
        %708 = vmatprep.mubr.f32.mxu0 %v283
        %709 = vmatmul.mubr.f32.gmra.mrb[0].mxu0 %v282
        %v710 = vpop.f32.mrb[0].mxu0
        %v711 = vadd.f32 %v598, %v710
        %v712 = vpop.f32.mrb[0].mxu0
        %v713 = vadd.f32 %v600, %v712
        %714 = vmatprep.mubr.f32.mxu0 %v287
        %715 = vmatmul.mubr.f32.gmra.mrb[0].mxu0 %v286
        %v716 = vpop.f32.mrb[0].mxu0
        %v717 = vadd.f32 %v604, %v716
        %v718 = vpop.f32.mrb[0].mxu0
        %v719 = vadd.f32 %v606, %v718
        %720 = vmatprep.mubr.f32.mxu0 %v291
        %721 = vmatmul.mubr.f32.gmra.mrb[0].mxu0 %v290
        %v722 = vpop.f32.mrb[0].mxu0
        %v723 = vadd.f32 %v610, %v722
        %v724 = vpop.f32.mrb[0].mxu0
        %v725 = vadd.f32 %v612, %v724
        %726 = vdwg.mxu0
        %727 = vmatprep.subr.mxu0 0.0
        %728 = vmatpush1.msra.mxu0 %v294
        %729 = vmatprep.subr.mxu0 0.0
        %730 = vmatpush1.msra.mxu0 %v297
        %731 = vmatprep.subr.mxu0 0.0
        %732 = vmatpush1.msra.mxu0 %v300
        %733 = vmatprep.subr.mxu0 0.0
        %734 = vmatpush1.msra.mxu0 %v303
        %735 = vmatprep.subr.mxu0 0.0
        %736 = vmatpush1.msra.mxu0 %v306
        %737 = vmatprep.subr.mxu0 0.0
        %738 = vmatpush1.msra.mxu0 %v309
        %739 = vmatprep.subr.mxu0 0.0
        %740 = vmatpush1.msra.mxu0 %v312
        %741 = vmatprep.subr.mxu0 0.0
        %742 = vmatpush1.msra.mxu0 %v315
        %743 = vmatprep.subr.mxu0 0.0
        %744 = vmatpush1.msra.mxu0 %v318
        %745 = vmatprep.subr.mxu0 0.0
        %746 = vmatpush1.msra.mxu0 %v321
        %747 = vmatprep.subr.mxu0 0.0
        %748 = vmatpush1.msra.mxu0 %v324
        %749 = vmatprep.subr.mxu0 0.0
        %750 = vmatpush1.msra.mxu0 %v327
        %751 = vmatprep.subr.mxu0 0.0
        %752 = vmatpush1.msra.mxu0 %v330
        %753 = vmatprep.subr.mxu0 0.0
        %754 = vmatpush1.msra.mxu0 %v333
        %755 = vmatprep.subr.mxu0 0.0
        %756 = vmatpush1.msra.mxu0 %v336
        %757 = vmatprep.subr.mxu0 0.0
        %758 = vmatpush1.msra.mxu0 %v339
        %759 = vmatprep.subr.mxu0 0.0
        %760 = vmatpush1.msra.mxu0 %v342
        %761 = vmatprep.subr.mxu0 0.0
        %762 = vmatpush1.msra.mxu0 %v345
        %763 = vmatprep.subr.mxu0 0.0
        %764 = vmatpush1.msra.mxu0 %v348
        %765 = vmatprep.subr.mxu0 0.0
        %766 = vmatpush1.msra.mxu0 %v351
        %767 = vmatprep.subr.mxu0 0.0
        %768 = vmatpush1.msra.mxu0 %v354
        %769 = vmatprep.subr.mxu0 0.0
        %770 = vmatpush1.msra.mxu0 %v357
        %771 = vmatprep.subr.mxu0 0.0
        %772 = vmatpush1.msra.mxu0 %v360
        %773 = vmatprep.subr.mxu0 0.0
        %774 = vmatpush1.msra.mxu0 %v363
        %775 = vmatprep.subr.mxu0 0.0
        %776 = vmatpush1.msra.mxu0 %v366
        %777 = vmatprep.subr.mxu0 0.0
        %778 = vmatpush1.msra.mxu0 %v369
        %779 = vmatprep.subr.mxu0 0.0
        %780 = vmatpush1.msra.mxu0 %v372
        %781 = vmatprep.subr.mxu0 0.0
        %782 = vmatpush1.msra.mxu0 %v375
        %783 = vmatprep.subr.mxu0 0.0
        %784 = vmatpush1.msra.mxu0 %v378
        %785 = vmatprep.subr.mxu0 0.0
        %786 = vmatpush1.msra.mxu0 %v381
        %787 = vmatprep.subr.mxu0 0.0
        %788 = vmatpush1.msra.mxu0 %v384
        %789 = vmatprep.subr.mxu0 0.0
        %790 = vmatpush1.msra.mxu0 %v387
        %791 = vmatprep.mubr.f32.mxu0 %v261
        %792 = vmatmul.mubr.f32.gmra.mrb[0].mxu0 %v260
        %v793 = vpop.f32.mrb[0].mxu0
        %v794 = vadd.f32 %v497, %v793
        %v795 = vpop.f32.mrb[0].mxu0
        %796 = vmatprep.mubr.f32.mxu0 %v265
        %797 = vmatmul.mubr.f32.gmra.mrb[0].mxu0 %v264
        %v798 = vpop.f32.mrb[0].mxu0
        %v799 = vadd.f32 %v497, %v798
        %v800 = vpop.f32.mrb[0].mxu0
        %801 = vmatprep.mubr.f32.mxu0 %v269
        %802 = vmatmul.mubr.f32.gmra.mrb[0].mxu0 %v268
        %v803 = vpop.f32.mrb[0].mxu0
        %v804 = vadd.f32 %v497, %v803
        %v805 = vpop.f32.mrb[0].mxu0
        %806 = vmatprep.mubr.f32.mxu0 %v273
        %807 = vmatmul.mubr.f32.gmra.mrb[0].mxu0 %v272
        %v808 = vpop.f32.mrb[0].mxu0
        %v809 = vadd.f32 %v497, %v808
        %v810 = vpop.f32.mrb[0].mxu0
        %811 = vmatprep.mubr.f32.mxu0 %v277
        %812 = vmatmul.mubr.f32.gmra.mrb[0].mxu0 %v276
        %v813 = vpop.f32.mrb[0].mxu0
        %v814 = vadd.f32 %v497, %v813
        %v815 = vpop.f32.mrb[0].mxu0
        %816 = vmatprep.mubr.f32.mxu0 %v281
        %817 = vmatmul.mubr.f32.gmra.mrb[0].mxu0 %v280
        %v818 = vpop.f32.mrb[0].mxu0
        %v819 = vadd.f32 %v497, %v818
        %v820 = vpop.f32.mrb[0].mxu0
        %821 = vmatprep.mubr.f32.mxu0 %v285
        %822 = vmatmul.mubr.f32.gmra.mrb[0].mxu0 %v284
        %v823 = vpop.f32.mrb[0].mxu0
        %v824 = vadd.f32 %v497, %v823
        %v825 = vpop.f32.mrb[0].mxu0
        %826 = vmatprep.mubr.f32.mxu0 %v289
        %827 = vmatmul.mubr.f32.gmra.mrb[0].mxu0 %v288
        %v828 = vpop.f32.mrb[0].mxu0
        %v829 = vadd.f32 %v497, %v828
        %v830 = vpop.f32.mrb[0].mxu0
        %831 = vdwg.mxu0
        %832 = vmatprep.subr.mxu0 0.0
        %833 = vmatpush1.msra.mxu0 %v390
        %834 = vmatprep.subr.mxu0 0.0
        %835 = vmatpush1.msra.mxu0 %v393
        %836 = vmatprep.subr.mxu0 0.0
        %837 = vmatpush1.msra.mxu0 %v396
        %838 = vmatprep.subr.mxu0 0.0
        %839 = vmatpush1.msra.mxu0 %v399
        %840 = vmatprep.subr.mxu0 0.0
        %841 = vmatpush1.msra.mxu0 %v402
        %842 = vmatprep.subr.mxu0 0.0
        %843 = vmatpush1.msra.mxu0 %v405
        %844 = vmatprep.subr.mxu0 0.0
        %845 = vmatpush1.msra.mxu0 %v408
        %846 = vmatprep.subr.mxu0 0.0
        %847 = vmatpush1.msra.mxu0 %v411
        %848 = vmatprep.subr.mxu0 0.0
        %849 = vmatpush1.msra.mxu0 %v414
        %850 = vmatprep.subr.mxu0 0.0
        %851 = vmatpush1.msra.mxu0 %v417
        %852 = vmatprep.subr.mxu0 0.0
        %853 = vmatpush1.msra.mxu0 %v420
        %854 = vmatprep.subr.mxu0 0.0
        %855 = vmatpush1.msra.mxu0 %v423
        %856 = vmatprep.subr.mxu0 0.0
        %857 = vmatpush1.msra.mxu0 %v426
        %858 = vmatprep.subr.mxu0 0.0
        %859 = vmatpush1.msra.mxu0 %v429
        %860 = vmatprep.subr.mxu0 0.0
        %861 = vmatpush1.msra.mxu0 %v432
        %862 = vmatprep.subr.mxu0 0.0
        %863 = vmatpush1.msra.mxu0 %v435
        %864 = vmatprep.subr.mxu0 0.0
        %865 = vmatpush1.msra.mxu0 %v438
        %866 = vmatprep.subr.mxu0 0.0
        %867 = vmatpush1.msra.mxu0 %v441
        %868 = vmatprep.subr.mxu0 0.0
        %869 = vmatpush1.msra.mxu0 %v444
        %870 = vmatprep.subr.mxu0 0.0
        %871 = vmatpush1.msra.mxu0 %v447
        %872 = vmatprep.subr.mxu0 0.0
        %873 = vmatpush1.msra.mxu0 %v450
        %874 = vmatprep.subr.mxu0 0.0
        %875 = vmatpush1.msra.mxu0 %v453
        %876 = vmatprep.subr.mxu0 0.0
        %877 = vmatpush1.msra.mxu0 %v456
        %878 = vmatprep.subr.mxu0 0.0
        %879 = vmatpush1.msra.mxu0 %v459
        %880 = vmatprep.subr.mxu0 0.0
        %881 = vmatpush1.msra.mxu0 %v462
        %882 = vmatprep.subr.mxu0 0.0
        %883 = vmatpush1.msra.mxu0 %v465
        %884 = vmatprep.subr.mxu0 0.0
        %885 = vmatpush1.msra.mxu0 %v468
        %886 = vmatprep.subr.mxu0 0.0
        %887 = vmatpush1.msra.mxu0 %v471
        %888 = vmatprep.subr.mxu0 0.0
        %889 = vmatpush1.msra.mxu0 %v474
        %890 = vmatprep.subr.mxu0 0.0
        %891 = vmatpush1.msra.mxu0 %v477
        %892 = vmatprep.subr.mxu0 0.0
        %893 = vmatpush1.msra.mxu0 %v480
        %894 = vmatprep.subr.mxu0 0.0
        %895 = vmatpush1.msra.mxu0 %v483
        %896 = vmatprep.mubr.f32.mxu0 %v263
        %897 = vmatmul.mubr.f32.gmra.mrb[0].mxu0 %v262
        %v898 = vpop.f32.mrb[0].mxu0
        %v899 = vadd.f32 %v794, %v898
        %v900 = vpop.f32.mrb[0].mxu0
        %901 = vmatprep.mubr.f32.mxu0 %v267
        %902 = vmatmul.mubr.f32.gmra.mrb[0].mxu0 %v266
        %v903 = vpop.f32.mrb[0].mxu0
        %v904 = vadd.f32 %v799, %v903
        %v905 = vpop.f32.mrb[0].mxu0
        %906 = vmatprep.mubr.f32.mxu0 %v271
        %907 = vmatmul.mubr.f32.gmra.mrb[0].mxu0 %v270
        %v908 = vpop.f32.mrb[0].mxu0
        %v909 = vadd.f32 %v804, %v908
        %v910 = vpop.f32.mrb[0].mxu0
        %911 = vmatprep.mubr.f32.mxu0 %v275
        %912 = vmatmul.mubr.f32.gmra.mrb[0].mxu0 %v274
        %v913 = vpop.f32.mrb[0].mxu0
        %v914 = vadd.f32 %v809, %v913
        %v915 = vpop.f32.mrb[0].mxu0
        %916 = vmatprep.mubr.f32.mxu0 %v279
        %917 = vmatmul.mubr.f32.gmra.mrb[0].mxu0 %v278
        %v918 = vpop.f32.mrb[0].mxu0
        %v919 = vadd.f32 %v814, %v918
        %v920 = vpop.f32.mrb[0].mxu0
        %921 = vmatprep.mubr.f32.mxu0 %v283
        %922 = vmatmul.mubr.f32.gmra.mrb[0].mxu0 %v282
        %v923 = vpop.f32.mrb[0].mxu0
        %v924 = vadd.f32 %v819, %v923
        %v925 = vpop.f32.mrb[0].mxu0
        %926 = vmatprep.mubr.f32.mxu0 %v287
        %927 = vmatmul.mubr.f32.gmra.mrb[0].mxu0 %v286
        %v928 = vpop.f32.mrb[0].mxu0
        %v929 = vadd.f32 %v824, %v928
        %v930 = vpop.f32.mrb[0].mxu0
        %931 = vmatprep.mubr.f32.mxu0 %v291
        %932 = vmatmul.mubr.f32.gmra.mrb[0].mxu0 %v290
        %v933 = vpop.f32.mrb[0].mxu0
        %v934 = vadd.f32 %v829, %v933
        %v935 = vpop.f32.mrb[0].mxu0
        %936 = vdwg.mxu0
        %v937 = vtanh.pop %v681
        %v938 = vtanh.pop %v687
        %v939 = vtanh.pop %v693
        %v940 = vtanh.pop %v699
        %v941 = vtanh.pop %v705
        %v942 = vtanh.pop %v711
        %v943 = vtanh.pop %v717
        %v944 = vtanh.pop %v723
        %v945 = vxor.u32 %v683, 2147483648
        %v946 = vxor.u32 %v689, 2147483648
        %v947 = vxor.u32 %v695, 2147483648
        %v948 = vxor.u32 %v701, 2147483648
        %v949 = vxor.u32 %v707, 2147483648
        %v950 = vxor.u32 %v713, 2147483648
        %v951 = vxor.u32 %v719, 2147483648
        %v952 = vxor.u32 %v725, 2147483648
        %v953 = vmul.f32 %v945, 1.442695
        %v954 = vpow.pop %v953
        %v955 = vmul.f32 %v946, 1.442695
        %v956 = vpow.pop %v955
        %v957 = vmul.f32 %v947, 1.442695
        %v958 = vpow.pop %v957
        %v959 = vmul.f32 %v948, 1.442695
        %v960 = vpow.pop %v959
        %v961 = vmul.f32 %v949, 1.442695
        %v962 = vpow.pop %v961
        %v963 = vmul.f32 %v950, 1.442695
        %v964 = vpow.pop %v963
        %v965 = vmul.f32 %v951, 1.442695
        %v966 = vpow.pop %v965
        %v967 = vmul.f32 %v952, 1.442695
        %v968 = vpow.pop %v967
        %v969 = vadd.f32 %v954, 1.0
        %v970 = vadd.f32 %v956, 1.0
        %v971 = vadd.f32 %v958, 1.0
        %v972 = vadd.f32 %v960, 1.0
        %v973 = vadd.f32 %v962, 1.0
        %v974 = vadd.f32 %v964, 1.0
        %v975 = vadd.f32 %v966, 1.0
        %v976 = vadd.f32 %v968, 1.0
        %v977 = vrcp.pop %v969
        %v978 = vmul.f32 1.0, %v977
        %v979 = vrcp.pop %v970
        %v980 = vmul.f32 1.0, %v979
        %v981 = vrcp.pop %v971
        %v982 = vmul.f32 1.0, %v981
        %v983 = vrcp.pop %v972
        %v984 = vmul.f32 1.0, %v983
        %v985 = vrcp.pop %v973
        %v986 = vmul.f32 1.0, %v985
        %v987 = vrcp.pop %v974
        %v988 = vmul.f32 1.0, %v987
        %v989 = vrcp.pop %v975
        %v990 = vmul.f32 1.0, %v989
        %v991 = vrcp.pop %v976
        %v992 = vmul.f32 1.0, %v991
        %v993 = vmul.f32 %v937, %v978
        %v994 = vmul.f32 %v938, %v980
        %v995 = vmul.f32 %v939, %v982
        %v996 = vmul.f32 %v940, %v984
        %v997 = vmul.f32 %v941, %v986
        %v998 = vmul.f32 %v942, %v988
        %v999 = vmul.f32 %v943, %v990
        %v1000 = vmul.f32 %v944, %v992
        %v1001 = vld [vmem:[%s3] sm:$0x1]
        %v1003 = vlaneseq
        %v1004 = vshrl.u32 %v1003, 7
        %v1005 = vsub.s32 0, %v1004
        %v1006 = vrot.slane %v1001, %v1005
        %v1008 = vmul.f32 %v993, %v1006
        %v1009 = vmul.f32 %v994, %v1006
        %v1010 = vmul.f32 %v995, %v1006
        %v1011 = vmul.f32 %v996, %v1006
        %v1012 = vmul.f32 %v997, %v1006
        %v1013 = vmul.f32 %v998, %v1006
        %v1014 = vmul.f32 %v999, %v1006
        %v1015 = vmul.f32 %v1000, %v1006
        %1016 = vadd.xlane.f32.xlu0 %v1008
        %v1017 = vpop.xlane.xlu0 %1016
        %1018 = vadd.xlane.f32.xlu0 %v1009
        %v1019 = vpop.xlane.xlu0 %1018
        %1020 = vadd.xlane.f32.xlu0 %v1010
        %v1021 = vpop.xlane.xlu0 %1020
        %1022 = vadd.xlane.f32.xlu0 %v1011
        %v1023 = vpop.xlane.xlu0 %1022
        %1024 = vadd.xlane.f32.xlu0 %v1012
        %v1025 = vpop.xlane.xlu0 %1024
        %1026 = vadd.xlane.f32.xlu0 %v1013
        %v1027 = vpop.xlane.xlu0 %1026
        %1028 = vadd.xlane.f32.xlu0 %v1014
        %v1029 = vpop.xlane.xlu0 %1028
        %1030 = vadd.xlane.f32.xlu0 %v1015
        %v1031 = vpop.xlane.xlu0 %1030
        %v1032 = vrot.slane %v1017, 4
        %v1033 = vmax.f32 %v1017, %v1032
        %v1034 = vrot.slane %v1033, 2
        %v1035 = vmax.f32 %v1033, %v1034
        %v1036 = vrot.slane %v1035, 1
        %v1037 = vmax.f32 %v1035, %v1036
        %v1038 = vrot.slane %v1019, 4
        %v1039 = vmax.f32 %v1019, %v1038
        %v1040 = vrot.slane %v1039, 2
        %v1041 = vmax.f32 %v1039, %v1040
        %v1042 = vrot.slane %v1041, 1
        %v1043 = vmax.f32 %v1041, %v1042
        %v1044 = vrot.slane %v1021, 4
        %v1045 = vmax.f32 %v1021, %v1044
        %v1046 = vrot.slane %v1045, 2
        %v1047 = vmax.f32 %v1045, %v1046
        %v1048 = vrot.slane %v1047, 1
        %v1049 = vmax.f32 %v1047, %v1048
        %v1050 = vrot.slane %v1023, 4
        %v1051 = vmax.f32 %v1023, %v1050
        %v1052 = vrot.slane %v1051, 2
        %v1053 = vmax.f32 %v1051, %v1052
        %v1054 = vrot.slane %v1053, 1
        %v1055 = vmax.f32 %v1053, %v1054
        %v1056 = vrot.slane %v1025, 4
        %v1057 = vmax.f32 %v1025, %v1056
        %v1058 = vrot.slane %v1057, 2
        %v1059 = vmax.f32 %v1057, %v1058
        %v1060 = vrot.slane %v1059, 1
        %v1061 = vmax.f32 %v1059, %v1060
        %v1062 = vrot.slane %v1027, 4
        %v1063 = vmax.f32 %v1027, %v1062
        %v1064 = vrot.slane %v1063, 2
        %v1065 = vmax.f32 %v1063, %v1064
        %v1066 = vrot.slane %v1065, 1
        %v1067 = vmax.f32 %v1065, %v1066
        %v1068 = vrot.slane %v1029, 4
        %v1069 = vmax.f32 %v1029, %v1068
        %v1070 = vrot.slane %v1069, 2
        %v1071 = vmax.f32 %v1069, %v1070
        %v1072 = vrot.slane %v1071, 1
        %v1073 = vmax.f32 %v1071, %v1072
        %v1074 = vrot.slane %v1031, 4
        %v1075 = vmax.f32 %v1031, %v1074
        %v1076 = vrot.slane %v1075, 2
        %v1077 = vmax.f32 %v1075, %v1076
        %v1078 = vrot.slane %v1077, 1
        %v1079 = vmax.f32 %v1077, %v1078
        %v1080 = vsub.f32 %v1017, %v1037
        %v1081 = vsub.f32 %v1019, %v1043
        %v1082 = vsub.f32 %v1021, %v1049
        %v1083 = vsub.f32 %v1023, %v1055
        %v1084 = vsub.f32 %v1025, %v1061
        %v1085 = vsub.f32 %v1027, %v1067
        %v1086 = vsub.f32 %v1029, %v1073
        %v1087 = vsub.f32 %v1031, %v1079
        %v1088 = vmul.f32 %v1080, 1.442695
        %v1089 = vpow.pop %v1088
        %v1090 = vmul.f32 %v1081, 1.442695
        %v1091 = vpow.pop %v1090
        %v1092 = vmul.f32 %v1082, 1.442695
        %v1093 = vpow.pop %v1092
        %v1094 = vmul.f32 %v1083, 1.442695
        %v1095 = vpow.pop %v1094
        %v1096 = vmul.f32 %v1084, 1.442695
        %v1097 = vpow.pop %v1096
        %v1098 = vmul.f32 %v1085, 1.442695
        %v1099 = vpow.pop %v1098
        %v1100 = vmul.f32 %v1086, 1.442695
        %v1101 = vpow.pop %v1100
        %v1102 = vmul.f32 %v1087, 1.442695
        %v1103 = vpow.pop %v1102
        %v1104 = vrot.slane %v1089, 4
        %v1105 = vadd.f32 %v1089, %v1104
        %v1106 = vrot.slane %v1105, 2
        %v1107 = vadd.f32 %v1105, %v1106
        %v1108 = vrot.slane %v1107, 1
        %v1109 = vadd.f32 %v1107, %v1108
        %v1110 = vrot.slane %v1091, 4
        %v1111 = vadd.f32 %v1091, %v1110
        %v1112 = vrot.slane %v1111, 2
        %v1113 = vadd.f32 %v1111, %v1112
        %v1114 = vrot.slane %v1113, 1
        %v1115 = vadd.f32 %v1113, %v1114
        %v1116 = vrot.slane %v1093, 4
        %v1117 = vadd.f32 %v1093, %v1116
        %v1118 = vrot.slane %v1117, 2
        %v1119 = vadd.f32 %v1117, %v1118
        %v1120 = vrot.slane %v1119, 1
        %v1121 = vadd.f32 %v1119, %v1120
        %v1122 = vrot.slane %v1095, 4
        %v1123 = vadd.f32 %v1095, %v1122
        %v1124 = vrot.slane %v1123, 2
        %v1125 = vadd.f32 %v1123, %v1124
        %v1126 = vrot.slane %v1125, 1
        %v1127 = vadd.f32 %v1125, %v1126
        %v1128 = vrot.slane %v1097, 4
        %v1129 = vadd.f32 %v1097, %v1128
        %v1130 = vrot.slane %v1129, 2
        %v1131 = vadd.f32 %v1129, %v1130
        %v1132 = vrot.slane %v1131, 1
        %v1133 = vadd.f32 %v1131, %v1132
        %v1134 = vrot.slane %v1099, 4
        %v1135 = vadd.f32 %v1099, %v1134
        %v1136 = vrot.slane %v1135, 2
        %v1137 = vadd.f32 %v1135, %v1136
        %v1138 = vrot.slane %v1137, 1
        %v1139 = vadd.f32 %v1137, %v1138
        %v1140 = vrot.slane %v1101, 4
        %v1141 = vadd.f32 %v1101, %v1140
        %v1142 = vrot.slane %v1141, 2
        %v1143 = vadd.f32 %v1141, %v1142
        %v1144 = vrot.slane %v1143, 1
        %v1145 = vadd.f32 %v1143, %v1144
        %v1146 = vrot.slane %v1103, 4
        %v1147 = vadd.f32 %v1103, %v1146
        %v1148 = vrot.slane %v1147, 2
        %v1149 = vadd.f32 %v1147, %v1148
        %v1150 = vrot.slane %v1149, 1
        %v1151 = vadd.f32 %v1149, %v1150
        %v1152 = vrcp.pop %v1109
        %v1153 = vmul.f32 %v1089, %v1152
        %v1154 = vrcp.pop %v1115
        %v1155 = vmul.f32 %v1091, %v1154
        %v1156 = vrcp.pop %v1121
        %v1157 = vmul.f32 %v1093, %v1156
        %v1158 = vrcp.pop %v1127
        %v1159 = vmul.f32 %v1095, %v1158
        %v1160 = vrcp.pop %v1133
        %v1161 = vmul.f32 %v1097, %v1160
        %v1162 = vrcp.pop %v1139
        %v1163 = vmul.f32 %v1099, %v1162
        %v1164 = vrcp.pop %v1145
        %v1165 = vmul.f32 %v1101, %v1164
        %v1166 = vrcp.pop %v1151
        %v1167 = vmul.f32 %v1103, %v1166
        %v1168 = vmul.f32 %v1153, %v899
        %v1169 = vmul.f32 %v1155, %v904
        %v1170 = vmul.f32 %v1157, %v909
        %v1171 = vmul.f32 %v1159, %v914
        %v1172 = vmul.f32 %v1161, %v919
        %v1173 = vmul.f32 %v1163, %v924
        %v1174 = vmul.f32 %v1165, %v929
        %v1175 = vmul.f32 %v1167, %v934
        %v1176 = vrot.slane %v1168, 4
        %v1177 = vadd.f32 %v1168, %v1176
        %v1178 = vrot.slane %v1177, 2
        %v1179 = vadd.f32 %v1177, %v1178
        %v1180 = vrot.slane %v1179, 1
        %v1181 = vadd.f32 %v1179, %v1180
        %v1182 = vrot.slane %v1169, 4
        %v1183 = vadd.f32 %v1169, %v1182
        %v1184 = vrot.slane %v1183, 2
        %v1185 = vadd.f32 %v1183, %v1184
        %v1186 = vrot.slane %v1185, 1
        %v1187 = vadd.f32 %v1185, %v1186
        %v1188 = vrot.slane %v1170, 4
        %v1189 = vadd.f32 %v1170, %v1188
        %v1190 = vrot.slane %v1189, 2
        %v1191 = vadd.f32 %v1189, %v1190
        %v1192 = vrot.slane %v1191, 1
        %v1193 = vadd.f32 %v1191, %v1192
        %v1194 = vrot.slane %v1171, 4
        %v1195 = vadd.f32 %v1171, %v1194
        %v1196 = vrot.slane %v1195, 2
        %v1197 = vadd.f32 %v1195, %v1196
        %v1198 = vrot.slane %v1197, 1
        %v1199 = vadd.f32 %v1197, %v1198
        %v1200 = vrot.slane %v1172, 4
        %v1201 = vadd.f32 %v1172, %v1200
        %v1202 = vrot.slane %v1201, 2
        %v1203 = vadd.f32 %v1201, %v1202
        %v1204 = vrot.slane %v1203, 1
        %v1205 = vadd.f32 %v1203, %v1204
        %v1206 = vrot.slane %v1173, 4
        %v1207 = vadd.f32 %v1173, %v1206
        %v1208 = vrot.slane %v1207, 2
        %v1209 = vadd.f32 %v1207, %v1208
        %v1210 = vrot.slane %v1209, 1
        %v1211 = vadd.f32 %v1209, %v1210
        %v1212 = vrot.slane %v1174, 4
        %v1213 = vadd.f32 %v1174, %v1212
        %v1214 = vrot.slane %v1213, 2
        %v1215 = vadd.f32 %v1213, %v1214
        %v1216 = vrot.slane %v1215, 1
        %v1217 = vadd.f32 %v1215, %v1216
        %v1218 = vrot.slane %v1175, 4
        %v1219 = vadd.f32 %v1175, %v1218
        %v1220 = vrot.slane %v1219, 2
        %v1221 = vadd.f32 %v1219, %v1220
        %v1222 = vrot.slane %v1221, 1
        %v1223 = vadd.f32 %v1221, %v1222
        %v1224 = vld [vmem:[%s4] sm:$0x1]
        %v1226 = vlaneseq
        %v1227 = vshrl.u32 %v1226, 7
        %v1228 = vsub.s32 0, %v1227
        %v1229 = vrot.slane %v1224, %v1228
        %v1231 = vadd.f32 %v1181, %v1229
        %v1232 = vadd.f32 %v1187, %v1229
        %v1233 = vadd.f32 %v1193, %v1229
        %v1234 = vadd.f32 %v1199, %v1229
        %v1235 = vadd.f32 %v1205, %v1229
        %v1236 = vadd.f32 %v1211, %v1229
        %v1237 = vadd.f32 %v1217, %v1229
        %v1238 = vadd.f32 %v1223, %v1229
        %v1247 = vrot.slane %v1232, 7
        %vm1248 = vcmask 1041409
        %v1249 = vsel %vm1248, %v1247, %v1231
        %v1250 = vrot.slane %v1233, 6
        %vm1251 = vcmask 1042434
        %v1252 = vsel %vm1251, %v1250, %v1249
        %v1253 = vrot.slane %v1234, 5
        %vm1254 = vcmask 1043459
        %v1255 = vsel %vm1254, %v1253, %v1252
        %v1256 = vrot.slane %v1235, 4
        %vm1257 = vcmask 1044484
        %v1258 = vsel %vm1257, %v1256, %v1255
        %v1259 = vrot.slane %v1236, 3
        %vm1260 = vcmask 1045509
        %v1261 = vsel %vm1260, %v1259, %v1258
        %v1262 = vrot.slane %v1237, 2
        %vm1263 = vcmask 1046534
        %v1264 = vsel %vm1263, %v1262, %v1261
        %v1265 = vrot.slane %v1238, 1
        %vm1266 = vcmask 1047559
        %v1267 = vsel %vm1266, %v1265, %v1264
        %1269 = vst [vmem:[%s258] sm:$0xff] %v1267
        %s1270 = sand.u32 %s141, 1
        %s1271 = scalar_lea.sflag [#allocation4], %s1270
        %s1272 = sand.u32 %s141, 1
        %s1273 = smul.addr %s1272, 8
        %s1274 = scalar_lea.vmem [#allocation7], %s1273
        // Predicated region
        $region49: #{tpu_custom_call.1} parent=39 // pred_check
          %p1275 = pneg %p151
        $region50: #{tpu_custom_call.1} parent=39 // pred_check_branch
          %1277 = sbr.rel (%p1275) target = $region52
        $region51: #{tpu_custom_call.1} parent=39 // pred_region
          %s1279 = ssub.s32 128, 128
          %1280 = vsyncadd %s1271, %s1279
          %s1281 = smul.addr %s23, 128
          %s1282 = scalar_lea.hbm %s5, %s1281
          %s1284 = sshll.u32 %s1274, 4
          %s1285 = int_to_ptr.vmem [resolvable:$true] %s1284
          %1287 = dma.vmem_to_hbm [thread:$0]  %s1285, 128, %s1282, %s1271
        $region52: #{tpu_custom_call.1} parent=39 // pred_fallthru
          _
      $region40: #{tpu_custom_call.1} parent=5 // pred_fallthru
        _
      %p1288 = scmp.le.s32.totalorder 2, %s18
      // Predicated region
      $region53: #{tpu_custom_call.1} parent=5 // pred_check
        %p1289 = pneg %p1288
      $region54: #{tpu_custom_call.1} parent=5 // pred_check_branch
        %1291 = sbr.rel (%p1289) target = $region56
      $region55: #{tpu_custom_call.1} parent=5 // pred_region
        %s1292 = ssub.s32 %s18, 2
        // Predicated region
        $region57: #{tpu_custom_call.1} parent=55 // pred_check
          %p1293 = pneg %p157
        $region58: #{tpu_custom_call.1} parent=55 // pred_check_branch
          %1295 = sbr.rel (%p1293) target = $region60
        $region59: #{tpu_custom_call.1} parent=55 // pred_region
          %s1296 = sand.u32 %s142, 1
          %s1297 = scalar_lea.sflag [#allocation4], %s1296
          %s1298 = sand.u32 %s142, 1
          %s1299 = smul.addr %s1298, 8
          %s1300 = scalar_lea.vmem [#allocation7], %s1299
          %1301 = dma.done %s1297, 128
        $region60: #{tpu_custom_call.1} parent=55 // pred_fallthru
          _
      $region56: #{tpu_custom_call.1} parent=5 // pred_fallthru
        _
    $region6: #{tpu_custom_call.1} parent=1 // loop_footer
      %s22 = sadd.s32 1, %s18
    $region7: #{tpu_custom_call.1} parent=1 // loop_footer_branch
      %17 = sbr.rel target = $region3
    $region8: #{tpu_custom_call.1} parent=1 // loop_exit
      _
    %1302 = vsyncpa [#allocation3], 1
    %s1303 = scalar_lea.sflag [#allocation3], 1
    %1304 = vsyncpa %s1303, 1
    %1305 = vsyncpa [#allocation6], 1
    %1306 = vsyncpa [#allocation4], 1
    %s1307 = scalar_lea.sflag [#allocation4], 1
    %1308 = vsyncpa %s1307, 1

</llo_original>
